<compile_context>
chip_gen: v5e
topology: v5e:2x2
jax: 0.10.0
libtpu: 0.0.40
codegen_flags: <defaults>
</compile_context>

<pallas_src>
import functools
import math

import jax
import jax.numpy as jnp
import numpy as np
from jax.experimental import pallas as pl
from jax.experimental.pallas import tpu as pltpu

F32 = jnp.float32
BF16 = jnp.bfloat16
LN_EPS = 1e-5
_BLOCK_M = 256


def _default_vmem_limit():
    # 128 MiB physical on v5e/v6e -> up to 96 MiB scoped; 64 MiB on v7x -> 32 MiB.
    try:
        cap = int(pltpu.get_tpu_info().vmem_capacity_bytes)
        return int(min(max(cap - 32 * 1024 * 1024, 32 * 1024 * 1024),
                       96 * 1024 * 1024))
    except Exception:
        return 48 * 1024 * 1024


_COMPILER_PARAMS = pltpu.CompilerParams(
    dimension_semantics=("parallel",),
    vmem_limit_bytes=_default_vmem_limit(),
)


# ----------------------------------------------------------------------------
# small helpers
# ----------------------------------------------------------------------------
def _round_up(x, m):
    return ((x + m - 1) // m) * m


def _choose_block(M, block_m=_BLOCK_M):
    """Return (padded_rows, block_rows); always >= 2 grid steps (v7x megacore)."""
    if M <= block_m:
        Mp = max(16, _round_up(M, 16))
        return Mp, Mp // 2
    Mp = _round_up(M, block_m)
    return Mp, block_m


def _pad_rows(x, Mp):
    M = x.shape[0]
    if M == Mp:
        return x
    return jnp.pad(x, ((0, Mp - M),) + ((0, 0),) * (x.ndim - 1))


def _full_spec(shape):
    n = len(shape)
    return pl.BlockSpec(shape, lambda i, n=n: (0,) * n)


def _ln(x, g, b):
    mu = jnp.mean(x, axis=-1, keepdims=True)
    var = jnp.mean(jnp.square(x - mu), axis=-1, keepdims=True)
    return (x - mu) * jax.lax.rsqrt(var + LN_EPS) * g + b


def wrap_angle(a):
    return (a + math.pi) % (2.0 * math.pi) - math.pi


def angle_between_2d(ctr, nbr):
    return jnp.arctan2(ctr[..., 0] * nbr[..., 1] - ctr[..., 1] * nbr[..., 0],
                       jnp.sum(ctr * nbr, axis=-1))


# ----------------------------------------------------------------------------
# Pallas kernels: fused LayerNorm + packed projection
# ----------------------------------------------------------------------------
def _ln_proj_kernel(x_ref, g_ref, b_ref, w_ref, bias_ref, o_ref, xn_ref):
    x = x_ref[...].astype(jnp.float32)
    xn = _ln(x, g_ref[...], b_ref[...])
    xn_ref[...] = xn.astype(xn_ref.dtype)
    y = jnp.dot(xn.astype(BF16), w_ref[...],
                preferred_element_type=jnp.float32) + bias_ref[...]
    o_ref[...] = y.astype(o_ref.dtype)


def _ln_proj_kernel_noxn(x_ref, g_ref, b_ref, w_ref, bias_ref, o_ref):
    x = x_ref[...].astype(jnp.float32)
    xn = _ln(x, g_ref[...], b_ref[...])
    y = jnp.dot(xn.astype(BF16), w_ref[...],
                preferred_element_type=jnp.float32) + bias_ref[...]
    o_ref[...] = y.astype(o_ref.dtype)


def ln_proj(x, g, b, w_bf16, bias, want_xn=False):
    """Fused LayerNorm + packed linear.  x:[M,H] f32, w:[H,P] bf16."""
    M, H = x.shape
    P = w_bf16.shape[1]
    Mp, bm = _choose_block(M)
    xp = _pad_rows(x.astype(F32), Mp)
    in_specs = [
        pl.BlockSpec((bm, H), lambda i: (i, 0)),
        _full_spec((1, H)), _full_spec((1, H)),
        _full_spec((H, P)), _full_spec((1, P)),
    ]
    args = (xp, g, b, w_bf16, bias)
    if want_xn:
        return pl.pallas_call(
            _ln_proj_kernel,
            out_shape=(jax.ShapeDtypeStruct((Mp, P), F32),
                       jax.ShapeDtypeStruct((Mp, H), F32)),
            grid=(Mp // bm,),
            in_specs=in_specs,
            out_specs=(pl.BlockSpec((bm, P), lambda i: (i, 0)),
                       pl.BlockSpec((bm, H), lambda i: (i, 0))),
            compiler_params=_COMPILER_PARAMS,
        )(*args)
    return pl.pallas_call(
        _ln_proj_kernel_noxn,
        out_shape=jax.ShapeDtypeStruct((Mp, P), F32),
        grid=(Mp // bm,),
        in_specs=in_specs,
        out_specs=pl.BlockSpec((bm, P), lambda i: (i, 0)),
        compiler_params=_COMPILER_PARAMS,
    )(*args)


# ----------------------------------------------------------------------------
# Pallas kernel: fused candidate-list attention + gate + out-proj + postLN + res
# ----------------------------------------------------------------------------
def _attn_gate_kernel(qs_ref, kvc_ref, krvr_ref, mask_ref, xn_ref, xraw_ref,
                      wga_ref, wgx_ref, bg_ref, wo_ref, bo_ref, pg_ref, pb_ref,
                      o_ref, *, nh, hd):
    D = nh * hd
    qs = qs_ref[...].astype(jnp.float32)
    q = qs[:, :D]                                   # scale already folded into wq
    s_val = qs[:, D:]
    kvc = kvc_ref[...].astype(jnp.float32) + krvr_ref[...].astype(jnp.float32)
    ke = kvc[:, :, :D]                              # [bm, K, D]
    ve = kvc[:, :, D:]                              # [bm, K, D]
    mask3 = mask_ref[...]                           # [bm, K, 1] f32 (0/1)
    neg = jnp.float32(-1e30)
    prod = ke * q[:, None, :]                       # [bm, K, D]
    heads = []
    for h in range(nh):                             # static loop, per-head softmax
        lo, hi = h * hd, (h + 1) * hd
        sim = jnp.sum(prod[:, :, lo:hi], axis=-1, keepdims=True)   # [bm, K, 1]
        sim = jnp.where(mask3 > 0.0, sim, neg)
        mmax = jnp.max(sim, axis=1, keepdims=True)                 # [bm, 1, 1]
        ex = jnp.exp(sim - mmax) * mask3
        den = jnp.sum(ex, axis=1, keepdims=True)
        attn = ex / (den + 1e-16)                   # PyG softmax semantics
        acc = jnp.sum(attn * ve[:, :, lo:hi], axis=1, keepdims=True)  # [bm,1,hd]
        heads.append(acc[:, 0, :])
    agg = jnp.concatenate(heads, axis=-1)           # [bm, D]
    xn = xn_ref[...].astype(jnp.float32)
    g = jnp.dot(agg.astype(BF16), wga_ref[...], preferred_element_type=jnp.float32)
    g = g + jnp.dot(xn.astype(BF16), wgx_ref[...], preferred_element_type=jnp.float32)
    g = jax.nn.sigmoid(g + bg_ref[...])
    o = agg + g * (s_val - agg)
    attn_out = jnp.dot(o.astype(BF16), wo_ref[...],
                       preferred_element_type=jnp.float32) + bo_ref[...]
    y = _ln(attn_out, pg_ref[...], pb_ref[...])
    o_ref[...] = (xraw_ref[...].astype(jnp.float32) + y).astype(o_ref.dtype)


def attn_gate_out(qs, kv_cand, krvr, mask3, xn, x_raw, p, nh, hd):
    Mp = qs.shape[0]
    D = nh * hd
    H = x_raw.shape[1]
    K = kv_cand.shape[1]
    _, bm = _choose_block(Mp)
    kern = functools.partial(_attn_gate_kernel, nh=nh, hd=hd)
    return pl.pallas_call(
        kern,
        out_shape=jax.ShapeDtypeStruct((Mp, H), F32),
        grid=(Mp // bm,),
        in_specs=[
            pl.BlockSpec((bm, 2 * D), lambda i: (i, 0)),       # q|s (dst)
            pl.BlockSpec((bm, K, 2 * D), lambda i: (i, 0, 0)),  # k|v candidates
            pl.BlockSpec((bm, K, 2 * D), lambda i: (i, 0, 0)),  # kr|vr candidates
            pl.BlockSpec((bm, K, 1), lambda i: (i, 0, 0)),      # edge mask
            pl.BlockSpec((bm, H), lambda i: (i, 0)),            # prenormed x_dst
            pl.BlockSpec((bm, H), lambda i: (i, 0)),            # raw x_dst (residual)
            _full_spec((D, D)), _full_spec((H, D)), _full_spec((1, D)),
            _full_spec((D, H)), _full_spec((1, H)),
            _full_spec((1, H)), _full_spec((1, H)),
        ],
        out_specs=pl.BlockSpec((bm, H), lambda i: (i, 0)),
        compiler_params=_COMPILER_PARAMS,
    )(qs, kv_cand, krvr, mask3, xn, x_raw,
      p["wg_a"], p["wg_x"], p["bg"], p["wo"], p["bo"], p["post_g"], p["post_b"])


# ----------------------------------------------------------------------------
# Pallas kernel: fused FFN block (preLN + w1 + relu + w2 + postLN + residual)
# ----------------------------------------------------------------------------
def _ffn_kernel(x_ref, preg_ref, preb_ref, w1_ref, b1_ref, w2_ref, b2_ref,
                postg_ref, postb_ref, o_ref):
    x = x_ref[...].astype(jnp.float32)
    h = _ln(x, preg_ref[...], preb_ref[...])
    h1 = jnp.dot(h.astype(BF16), w1_ref[...],
                 preferred_element_type=jnp.float32) + b1_ref[...]
    h1 = jnp.maximum(h1, 0.0).astype(BF16)
    h2 = jnp.dot(h1, w2_ref[...], preferred_element_type=jnp.float32) + b2_ref[...]
    y = _ln(h2, postg_ref[...], postb_ref[...])
    o_ref[...] = (x + y).astype(o_ref.dtype)


def ffn_block(x, p):
    Mp, H = x.shape
    H4 = p["ff_w1"].shape[1]
    _, bm = _choose_block(Mp)
    return pl.pallas_call(
        _ffn_kernel,
        out_shape=jax.ShapeDtypeStruct((Mp, H), F32),
        grid=(Mp // bm,),
        in_specs=[
            pl.BlockSpec((bm, H), lambda i: (i, 0)),
            _full_spec((1, H)), _full_spec((1, H)),
            _full_spec((H, H4)), _full_spec((1, H4)),
            _full_spec((H4, H)), _full_spec((1, H)),
            _full_spec((1, H)), _full_spec((1, H)),
        ],
        out_specs=pl.BlockSpec((bm, H), lambda i: (i, 0)),
        compiler_params=_COMPILER_PARAMS,
    )(x, p["ffpre_g"], p["ffpre_b"], p["ff_w1"], p["ff_b1"], p["ff_w2"],
      p["ff_b2"], p["ffpost_g"], p["ffpost_b"])


# ----------------------------------------------------------------------------
# Pallas kernel: fused FourierEmbedding (with / without categorical term)
# ----------------------------------------------------------------------------
def _fourier_body(x_ref, cat_val, fbd_ref, w1c_ref, w1s_ref, w1x_ref, b1_ref,
                  g1_ref, be1_ref, red_ref, bc_ref, w2_ref, b2_ref,
                  gout_ref, beout_ref, wout_ref, bout_ref, o_ref):
    x = x_ref[...].astype(jnp.float32)
    # phase[:, i*Fb+j] = 2*pi * x[:, i] * freqs[i, j]  (block-diagonal matmul)
    phase = jnp.dot(x, fbd_ref[...], preferred_element_type=jnp.float32)
    cosf = jnp.cos(phase).astype(BF16)
    sinf = jnp.sin(phase).astype(BF16)
    h = (jnp.dot(cosf, w1c_ref[...], preferred_element_type=jnp.float32)
         + jnp.dot(sinf, w1s_ref[...], preferred_element_type=jnp.float32)
         + jnp.dot(x, w1x_ref[...], preferred_element_type=jnp.float32)
         + b1_ref[...])
    # per-feature LayerNorm: block mean/var via narrow reduce + broadcast matmuls
    red = red_ref[...]                               # [DH, din]
    bc = bc_ref[...]                                 # [din, DH]
    m = jnp.dot(jnp.dot(h, red, preferred_element_type=jnp.float32), bc,
                preferred_element_type=jnp.float32)
    c = h - m
    v = jnp.dot(jnp.dot(c * c, red, preferred_element_type=jnp.float32), bc,
                preferred_element_type=jnp.float32)
    hn = c * jax.lax.rsqrt(v + LN_EPS) * g1_ref[...] + be1_ref[...]
    hr = jnp.maximum(hn, 0.0).astype(BF16)           # bf16 early -> fewer f32 temps
    # stacked second Linear(H, H): the sum over features folds into the contraction
    acc = jnp.dot(hr, w2_ref[...], preferred_element_type=jnp.float32) + b2_ref[...]
    if cat_val is not None:
        acc = acc + cat_val
    hh = jnp.maximum(_ln(acc, gout_ref[...], beout_ref[...]), 0.0)
    o_ref[...] = (jnp.dot(hh.astype(BF16), wout_ref[...],
                          preferred_element_type=jnp.float32)
                  + bout_ref[...]).astype(o_ref.dtype)


def _fourier_kernel_cat(x_ref, cat_ref, *rest):
    _fourier_body(x_ref, cat_ref[...].astype(jnp.float32), *rest)


def _fourier_kernel_nocat(x_ref, *rest):
    _fourier_body(x_ref, None, *rest)


def fourier_embed(pp, x, cat_emb=None):
    """Fused FourierEmbedding forward.  Returns row-PADDED output [Mp, H]."""
    M, din = x.shape
    H, Fb = pp["H"], pp["Fb"]
    DF, DH = din * Fb, din * H
    Mp, bm = _choose_block(M)
    xp = _pad_rows(x.astype(F32), Mp)
    in_specs = [pl.BlockSpec((bm, din), lambda i: (i, 0))]
    args = [xp]
    if cat_emb is not None:
        in_specs.append(pl.BlockSpec((bm, H), lambda i: (i, 0)))
        args.append(_pad_rows(cat_emb.astype(F32), Mp))
        kernel = _fourier_kernel_cat
    else:
        kernel = _fourier_kernel_nocat
    in_specs += [
        _full_spec((din, DF)),     # freqs block-diag (incl 2*pi)
        _full_spec((DF, DH)),      # w1 cos rows (bf16)
        _full_spec((DF, DH)),      # w1 sin rows (bf16)
        _full_spec((din, DH)),     # w1 x rows (f32)
        _full_spec((1, DH)),       # b1
        _full_spec((1, DH)),       # LN1 gamma
        _full_spec((1, DH)),       # LN1 beta
        _full_spec((DH, din)),     # block reduce (1/H)
        _full_spec((din, DH)),     # block broadcast (ones)
        _full_spec((DH, H)),       # w2 stacked (bf16)
        _full_spec((1, H)),        # b2 summed
        _full_spec((1, H)),        # out LN gamma
        _full_spec((1, H)),        # out LN beta
        _full_spec((H, H)),        # wout (bf16)
        _full_spec((1, H)),        # bout
    ]
    args += [pp["freqs_bd"], pp["w1_cos"], pp["w1_sin"], pp["w1_x"], pp["b1"],
             pp["g1"], pp["be1"], pp["red"], pp["bc"], pp["w2"], pp["b2"],
             pp["gout"], pp["beout"], pp["wout"], pp["bout"]]
    return pl.pallas_call(
        kernel,
        out_shape=jax.ShapeDtypeStruct((Mp, H), F32),
        grid=(Mp // bm,),
        in_specs=in_specs,
        out_specs=pl.BlockSpec((bm, H), lambda i: (i, 0)),
        compiler_params=_COMPILER_PARAMS,
    )(*args)


# ----------------------------------------------------------------------------
# parameter init (deterministic, synthetic) -- torch-like layout
# ----------------------------------------------------------------------------
def init_fourier(key, din, H, Fb):
    ks = jax.random.split(key, 4)
    return dict(
        freqs=jax.random.normal(ks[0], (din, Fb), F32),
        w1=jax.random.normal(ks[1], (din, 2 * Fb + 1, H), F32) * 0.2,
        b1=jnp.zeros((din, H), F32),
        g1=jnp.ones((din, H), F32),
        be1=jnp.zeros((din, H), F32),
        w2=jax.random.normal(ks[2], (din, H, H), F32) * (1.0 / math.sqrt(H)),
        b2=jnp.zeros((din, H), F32),
        gout=jnp.ones((H,), F32),
        beout=jnp.zeros((H,), F32),
        wout=jax.random.normal(ks[3], (H, H), F32) * (1.0 / math.sqrt(H)),
        bout=jnp.zeros((H,), F32),
    )


def init_attn(key, H, nh, hd, bipartite):
    D = nh * hd
    ks = jax.random.split(key, 10)
    s = 1.0 / math.sqrt(H)
    p = dict(
        ln_src_g=jnp.ones((H,), F32), ln_src_b=jnp.zeros((H,), F32),
        ln_r_g=jnp.ones((H,), F32), ln_r_b=jnp.zeros((H,), F32),
        wq=jax.random.normal(ks[0], (H, D), F32) * s, bq=jnp.zeros((D,), F32),
        wk=jax.random.normal(ks[1], (H, D), F32) * s, bk=jnp.zeros((D,), F32),   # bias=False
        wv=jax.random.normal(ks[2], (H, D), F32) * s, bv=jnp.zeros((D,), F32),
        wkr=jax.random.normal(ks[3], (H, D), F32) * s, bkr=jnp.zeros((D,), F32),  # bias=False
        wvr=jax.random.normal(ks[4], (H, D), F32) * s, bvr=jnp.zeros((D,), F32),
        ws=jax.random.normal(ks[5], (H, D), F32) * s, bs=jnp.zeros((D,), F32),
        wg=jax.random.normal(ks[6], (D + H, D), F32) * (1.0 / math.sqrt(D + H)),
        bg=jnp.zeros((D,), F32),
        wo=jax.random.normal(ks[7], (D, H), F32) * (1.0 / math.sqrt(D)),
        bo=jnp.zeros((H,), F32),
        post_g=jnp.ones((H,), F32), post_b=jnp.zeros((H,), F32),
        ffpre_g=jnp.ones((H,), F32), ffpre_b=jnp.zeros((H,), F32),
        ffpost_g=jnp.ones((H,), F32), ffpost_b=jnp.zeros((H,), F32),
        ff_w1=jax.random.normal(ks[8], (H, 4 * H), F32) * s,
        ff_b1=jnp.zeros((4 * H,), F32),
        ff_w2=jax.random.normal(ks[9], (4 * H, H), F32) * (1.0 / math.sqrt(4 * H)),
        ff_b2=jnp.zeros((H,), F32),
    )
    if bipartite:
        p["ln_dst_g"] = jnp.ones((H,), F32)
        p["ln_dst_b"] = jnp.zeros((H,), F32)
    return p


# ----------------------------------------------------------------------------
# one-time host-side weight packing (lane-dense, bf16 MXU operands)
# ----------------------------------------------------------------------------
def pack_fourier(p):
    din, Fb = p["freqs"].shape
    H = p["wout"].shape[0]
    DF, DH = din * Fb, din * H
    freqs_bd = jnp.zeros((din, DF), F32)
    w1_cos = jnp.zeros((DF, DH), F32)
    w1_sin = jnp.zeros((DF, DH), F32)
    w1_x = jnp.zeros((din, DH), F32)
    for i in range(din):
        freqs_bd = freqs_bd.at[i, i * Fb:(i + 1) * Fb].set(p["freqs"][i] * (2.0 * math.pi))
        w1_cos = w1_cos.at[i * Fb:(i + 1) * Fb, i * H:(i + 1) * H].set(p["w1"][i, :Fb, :])
        w1_sin = w1_sin.at[i * Fb:(i + 1) * Fb, i * H:(i + 1) * H].set(p["w1"][i, Fb:2 * Fb, :])
        w1_x = w1_x.at[i, i * H:(i + 1) * H].set(p["w1"][i, 2 * Fb, :])
    red = jnp.kron(jnp.eye(din, dtype=F32), jnp.ones((H, 1), F32) / float(H))
    bc = jnp.kron(jnp.eye(din, dtype=F32), jnp.ones((1, H), F32))
    return dict(
        din=din, Fb=Fb, H=H,
        freqs_bd=freqs_bd,
        w1_cos=w1_cos.astype(BF16),
        w1_sin=w1_sin.astype(BF16),
        w1_x=w1_x,                                       # keep f32 (tiny, precision)
        b1=p["b1"].reshape(1, DH).astype(F32),
        g1=p["g1"].reshape(1, DH).astype(F32),
        be1=p["be1"].reshape(1, DH).astype(F32),
        red=red, bc=bc,
        w2=p["w2"].reshape(DH, H).astype(BF16),
        b2=jnp.sum(p["b2"], axis=0).reshape(1, H).astype(F32),
        gout=p["gout"].reshape(1, H).astype(F32),
        beout=p["beout"].reshape(1, H).astype(F32),
        wout=p["wout"].astype(BF16),
        bout=p["bout"].reshape(1, H).astype(F32),
    )


def pack_attn(p, H, D, hd, bipartite):
    scale = hd ** -0.5
    wq = p["wq"] * scale                                  # fold qk scale into wq/bq
    bq = p["bq"] * scale
    out = dict(
        bipartite=bipartite,
        ln_r_g=p["ln_r_g"].reshape(1, H).astype(F32),
        ln_r_b=p["ln_r_b"].reshape(1, H).astype(F32),
        # NOTE: bk / bkr are bias=False in the reference -> packed zero segments.
        w_kr_vr=jnp.concatenate([p["wkr"], p["wvr"]], axis=1).astype(BF16),
        b_kr_vr=jnp.concatenate([p["bkr"], p["bvr"]]).reshape(1, 2 * D).astype(F32),
        wg_a=p["wg"][:D].astype(BF16),
        wg_x=p["wg"][D:].astype(BF16),
        bg=p["bg"].reshape(1, D).astype(F32),
        wo=p["wo"].astype(BF16),
        bo=p["bo"].reshape(1, H).astype(F32),
        post_g=p["post_g"].reshape(1, H).astype(F32),
        post_b=p["post_b"].reshape(1, H).astype(F32),
        ffpre_g=p["ffpre_g"].reshape(1, H).astype(F32),
        ffpre_b=p["ffpre_b"].reshape(1, H).astype(F32),
        ffpost_g=p["ffpost_g"].reshape(1, H).astype(F32),
        ffpost_b=p["ffpost_b"].reshape(1, H).astype(F32),
        ff_w1=p["ff_w1"].astype(BF16),
        ff_b1=p["ff_b1"].reshape(1, 4 * H).astype(F32),
        ff_w2=p["ff_w2"].astype(BF16),
        ff_b2=p["ff_b2"].reshape(1, H).astype(F32),
    )
    if bipartite:
        out["ln_dst_g"] = p["ln_dst_g"].reshape(1, H).astype(F32)
        out["ln_dst_b"] = p["ln_dst_b"].reshape(1, H).astype(F32)
        out["ln_src_g"] = p["ln_src_g"].reshape(1, H).astype(F32)
        out["ln_src_b"] = p["ln_src_b"].reshape(1, H).astype(F32)
        out["w_q_s"] = jnp.concatenate([wq, p["ws"]], axis=1).astype(BF16)
        out["b_q_s"] = jnp.concatenate([bq, p["bs"]]).reshape(1, 2 * D).astype(F32)
        out["w_k_v"] = jnp.concatenate([p["wk"], p["wv"]], axis=1).astype(BF16)
        out["b_k_v"] = jnp.concatenate([p["bk"], p["bv"]]).reshape(1, 2 * D).astype(F32)
    else:  # shared prenorm for src/dst; packed q|s|k|v
        out["ln_x_g"] = p["ln_src_g"].reshape(1, H).astype(F32)
        out["ln_x_b"] = p["ln_src_b"].reshape(1, H).astype(F32)
        out["w_qskv"] = jnp.concatenate([wq, p["ws"], p["wk"], p["wv"]],
                                        axis=1).astype(BF16)
        out["b_qskv"] = jnp.concatenate([bq, p["bs"], p["bk"], p["bv"]]
                                        ).reshape(1, 4 * D).astype(F32)
    return out


# ----------------------------------------------------------------------------
# graph candidate construction (host-side, like torch_cluster / dense_to_sparse)
# ----------------------------------------------------------------------------
def _group_candidates(batch_src, batch_dst):
    """Per-dst candidate lists = all src nodes sharing the dst's batch id."""
    # TODO(synk): batch_s/batch_pl are consumed host-side (static graph build,
    # same requirement as torch_geometric); do not trace this function.
    bs = np.asarray(jax.device_get(batch_src)).astype(np.int64)
    bd = np.asarray(jax.device_get(batch_dst)).astype(np.int64)
    groups = {}
    for idx, b in enumerate(bs.tolist()):
        groups.setdefault(b, []).append(idx)
    K = max([len(v) for v in groups.values()] + [1])
    Nd = bd.shape[0]
    cand = np.zeros((Nd, K), np.int32)
    valid = np.zeros((Nd, K), np.bool_)
    for d, b in enumerate(bd.tolist()):
        lst = groups.get(b, [])
        if lst:
            cand[d, :len(lst)] = np.asarray(lst, np.int32)
            valid[d, :len(lst)] = True
    return jnp.asarray(cand), jnp.asarray(valid)


# ----------------------------------------------------------------------------
# AttentionLayer (fixed-width per-destination candidate lists)
# ----------------------------------------------------------------------------
def attention_layer(p, x, r_emb_pad, cand, mask3, nh, hd, n_dst_pad):
    D = nh * hd
    K = cand.shape[1]
    if p["bipartite"]:
        x_src_pad, x_dst_pad = x
        qs, xn_dst = ln_proj(x_dst_pad, p["ln_dst_g"], p["ln_dst_b"],
                             p["w_q_s"], p["b_q_s"], want_xn=True)
        kv = ln_proj(x_src_pad, p["ln_src_g"], p["ln_src_b"],
                     p["w_k_v"], p["b_k_v"])
    else:
        x_dst_pad = x
        proj, xn_dst = ln_proj(x, p["ln_x_g"], p["ln_x_b"],
                               p["w_qskv"], p["b_qskv"], want_xn=True)
        qs = proj[:, :2 * D]
        kv = proj[:, 2 * D:]
    krvr = ln_proj(r_emb_pad, p["ln_r_g"], p["ln_r_b"], p["w_kr_vr"], p["b_kr_vr"])
    krvr = krvr[:n_dst_pad * K].reshape(n_dst_pad, K, 2 * D)
    # TODO(synk): move this candidate gather into the attention kernel via a
    # manual DMA gather to remove the remaining O(E*D) wrapper-side HBM pass.
    kv_cand = jnp.take(kv, cand, axis=0)                 # [n_dst_pad, K, 2D]
    y = attn_gate_out(qs, kv_cand, krvr, mask3, xn_dst, x_dst_pad, p, nh, hd)
    return ffn_block(y, p)


# ----------------------------------------------------------------------------
# QCNetAgentEncoder forward
# ----------------------------------------------------------------------------
def qcnet_agent_encoder(params, cfg, map_enc_x_pl, mask, pos_a, motion_vector_a,
                        head_a, pos_pl, orient_pl, vel, agent_type,
                        batch_s, batch_pl):
    H = cfg["hidden_dim"]
    T = cfg["num_historical_steps"]
    nh, hd = cfg["num_heads"], cfg["head_dim"]
    time_span = cfg["time_span"] if cfg["time_span"] is not None else T
    input_dim = cfg["input_dim"]
    Na = pos_a.shape[0]
    Npl = pos_pl.shape[0]
    Ns = Na * T
    Ns_pad, _ = _choose_block(Ns)

    head_vector_a = jnp.stack([jnp.cos(head_a), jnp.sin(head_a)], axis=-1)

    # ---- node features; everything kept in TIME-MAJOR layout (node = t*Na + a)
    x_a_feat_at = jnp.stack([
        jnp.linalg.norm(motion_vector_a[:, :, :2], axis=-1),
        angle_between_2d(head_vector_a, motion_vector_a[:, :, :2]),
        jnp.linalg.norm(vel[:, :, :2], axis=-1),
        angle_between_2d(head_vector_a, vel[:, :, :2]),
    ], axis=-1)                                                  # [Na, T, 4]
    x_a_feat = jnp.transpose(x_a_feat_at, (1, 0, 2)).reshape(Ns, 4).astype(F32)
    type_emb = params["type_a_emb"][agent_type]                  # [Na, H]
    cat_emb = jnp.tile(type_emb, (T, 1))                         # time-major
    x_a = fourier_embed(params["x_a_emb"], x_a_feat, cat_emb)    # [Ns_pad, H]

    pos_s = jnp.transpose(pos_a, (1, 0, 2)).reshape(Ns, input_dim)
    head_s = jnp.transpose(head_a, (1, 0)).reshape(Ns)
    head_vec_s = jnp.transpose(head_vector_a, (1, 0, 2)).reshape(Ns, 2)
    mask_s = jnp.transpose(mask, (1, 0)).reshape(Ns)
    pos_pl_rep = jnp.tile(pos_pl, (T, 1))
    orient_pl_rep = jnp.tile(orient_pl, (T,))

    # ---- temporal candidates: src time = dst time - delta, same agent ----
    span = max(1, min(int(time_span), T - 1))
    deltas = jnp.arange(1, span + 1)
    t_dst = jnp.repeat(jnp.arange(T), Na)
    a_dst = jnp.tile(jnp.arange(Na), T)
    src_time = t_dst[:, None] - deltas[None, :]                  # [Ns, span]
    cand_t = jnp.clip(src_time, 0, T - 1) * Na + a_dst[:, None]
    valid_t = (src_time >= 0) & mask_s[cand_t] & mask_s[:, None]
    rel_pos_t = pos_s[cand_t] - pos_s[:, None, :]
    rel_head_t = wrap_angle(head_s[cand_t] - head_s[:, None])
    r_t_feat = jnp.stack([
        jnp.linalg.norm(rel_pos_t[..., :2], axis=-1),
        angle_between_2d(head_vec_s[:, None, :], rel_pos_t[..., :2]),
        rel_head_t,
        (src_time - t_dst[:, None]).astype(F32),
    ], axis=-1)

    # ---- pl -> a candidates (same-batch pl nodes, radius mask) ----
    # TODO(synk): torch_cluster max_num_neighbors=300 cap not reproduced.
    # TODO(synk): radius test uses f32 (reference casts positions to float64).
    cand_pl, grp_pl = _group_candidates(batch_pl, batch_s)
    d_pl = jnp.linalg.norm(pos_pl_rep[cand_pl][..., :2] - pos_s[:, None, :2], axis=-1)
    valid_pl = grp_pl & (d_pl <= cfg["pl2a_radius"]) & mask_s[:, None]
    rel_pos_pl = pos_pl_rep[cand_pl] - pos_s[:, None, :]
    rel_orient_pl = wrap_angle(orient_pl_rep[cand_pl] - head_s[:, None])
    r_pl_feat = jnp.stack([
        jnp.linalg.norm(rel_pos_pl[..., :2], axis=-1),
        angle_between_2d(head_vec_s[:, None, :], rel_pos_pl[..., :2]),
        rel_orient_pl,
    ], axis=-1)

    # ---- a -> a candidates (same-batch agent nodes, no self-loop) ----
    cand_a, grp_a = _group_candidates(batch_s, batch_s)
    d_a = jnp.linalg.norm(pos_s[cand_a][..., :2] - pos_s[:, None, :2], axis=-1)
    not_self = cand_a != jnp.arange(Ns)[:, None]
    valid_a = (grp_a & not_self & (d_a <= cfg["a2a_radius"])
               & mask_s[cand_a] & mask_s[:, None])
    rel_pos_a = pos_s[cand_a] - pos_s[:, None, :]
    rel_head_a = wrap_angle(head_s[cand_a] - head_s[:, None])
    r_a_feat = jnp.stack([
        jnp.linalg.norm(rel_pos_a[..., :2], axis=-1),
        angle_between_2d(head_vec_s[:, None, :], rel_pos_a[..., :2]),
        rel_head_a,
    ], axis=-1)

    # ---- relation embeddings (computed once; rows padded to Ns_pad * K) ----
    def prep_edges(emb_params, feat, cand, valid):
        K = feat.shape[1]
        featp = _pad_rows(feat.astype(F32), Ns_pad)
        r_emb = fourier_embed(emb_params, featp.reshape(Ns_pad * K, feat.shape[-1]))
        candp = _pad_rows(cand.astype(jnp.int32), Ns_pad)
        mask3 = _pad_rows(valid.astype(F32), Ns_pad)[:, :, None]
        return r_emb, candp, mask3

    r_t_emb, cand_t_p, mask_t3 = prep_edges(params["r_t_emb"], r_t_feat, cand_t, valid_t)
    r_pl_emb, cand_pl_p, mask_pl3 = prep_edges(params["r_pl2a_emb"], r_pl_feat,
                                               cand_pl, valid_pl)
    r_a_emb, cand_a_p, mask_a3 = prep_edges(params["r_a2a_emb"], r_a_feat,
                                            cand_a, valid_a)

    # ---- map features (time-major pl layout), padded once ----
    x_pl_s = jnp.transpose(map_enc_x_pl, (1, 0, 2)).reshape(T * Npl, H)
    Npl_pad, _ = _choose_block(T * Npl)
    x_pl_pad = _pad_rows(x_pl_s.astype(F32), Npl_pad)

    # ---- attention stack (one layout; rows carried padded to Ns_pad) ----
    x = x_a
    for i in range(cfg["num_agent_layers"]):
        x = attention_layer(params["t_attn"][i], x, r_t_emb,
                            cand_t_p, mask_t3, nh, hd, Ns_pad)
        x = attention_layer(params["pl2a_attn"][i], (x_pl_pad, x), r_pl_emb,
                            cand_pl_p, mask_pl3, nh, hd, Ns_pad)
        x = attention_layer(params["a2a_attn"][i], x, r_a_emb,
                            cand_a_p, mask_a3, nh, hd, Ns_pad)
    x_out = x[:Ns].reshape(T, Na, H).transpose(1, 0, 2)
    return {"x_a": x_out}


# ----------------------------------------------------------------------------
if __name__ == "__main__":
    Na, Npl, T = 3, 5, 8
    H, Fb, nh, hd = 32, 4, 4, 8
    D = nh * hd
    num_layers = 2
    cfg = dict(input_dim=2, hidden_dim=H, num_historical_steps=T, time_span=4,
               pl2a_radius=10.0, a2a_radius=10.0, num_freq_bands=Fb,
               num_agent_layers=num_layers, num_heads=nh, head_dim=hd)

    ks = jax.random.split(jax.random.PRNGKey(0), 16)
    params = dict(
        type_a_emb=jax.random.normal(ks[0], (10, H), F32),
        x_a_emb=pack_fourier(init_fourier(ks[1], 4, H, Fb)),
        r_t_emb=pack_fourier(init_fourier(ks[2], 4, H, Fb)),
        r_pl2a_emb=pack_fourier(init_fourier(ks[3], 3, H, Fb)),
        r_a2a_emb=pack_fourier(init_fourier(ks[4], 3, H, Fb)),
        t_attn=[pack_attn(init_attn(ks[5 + i], H, nh, hd, False), H, D, hd, False)
                for i in range(num_layers)],
        pl2a_attn=[pack_attn(init_attn(ks[8 + i], H, nh, hd, True), H, D, hd, True)
                   for i in range(num_layers)],
        a2a_attn=[pack_attn(init_attn(ks[11 + i], H, nh, hd, False), H, D, hd, False)
                  for i in range(num_layers)],
    )

    ik = jax.random.split(jax.random.PRNGKey(1), 9)
    map_enc_x_pl = jax.random.normal(ik[0], (Npl, T, H), F32)
    mask = jax.random.bernoulli(ik[1], 0.9, (Na, T))
    pos_a = jax.random.normal(ik[2], (Na, T, 2), F32) * 5.0
    motion_vector_a = jax.random.normal(ik[3], (Na, T, 2), F32)
    head_a = jax.random.uniform(ik[4], (Na, T), F32, -math.pi, math.pi)
    pos_pl = jax.random.normal(ik[5], (Npl, 2), F32) * 5.0
    orient_pl = jax.random.uniform(ik[6], (Npl,), F32, -math.pi, math.pi)
    vel = jax.random.normal(ik[7], (Na, T, 2), F32)
    agent_type = jax.random.randint(ik[8], (Na,), 0, 10)
    batch_s = jnp.repeat(jnp.arange(T), Na)     # time-major agent nodes -> scene*t
    batch_pl = jnp.repeat(jnp.arange(T), Npl)   # time-major polyline nodes -> scene*t

    out = qcnet_agent_encoder(params, cfg, map_enc_x_pl, mask, pos_a,
                              motion_vector_a, head_a, pos_pl, orient_pl, vel,
                              agent_type, batch_s, batch_pl)
    xa = jax.block_until_ready(out["x_a"])
    assert xa.shape == (Na, T, H) and bool(jnp.all(jnp.isfinite(xa)))
    print("KERNEL_OK")
</pallas_src>

<mosaic_0001>
module attributes {stable_mosaic.version = 11 : i64} {
  func.func @_fourier_kernel_cat(%arg0: i32, %arg1: memref<16x4xf32, #tpu.memory_space<vmem>>, %arg2: memref<16x32xf32, #tpu.memory_space<vmem>>, %arg3: memref<4x16xf32, #tpu.memory_space<vmem>>, %arg4: memref<16x128xbf16, #tpu.memory_space<vmem>>, %arg5: memref<16x128xbf16, #tpu.memory_space<vmem>>, %arg6: memref<4x128xf32, #tpu.memory_space<vmem>>, %arg7: memref<1x128xf32, #tpu.memory_space<vmem>>, %arg8: memref<1x128xf32, #tpu.memory_space<vmem>>, %arg9: memref<1x128xf32, #tpu.memory_space<vmem>>, %arg10: memref<128x4xf32, #tpu.memory_space<vmem>>, %arg11: memref<4x128xf32, #tpu.memory_space<vmem>>, %arg12: memref<128x32xbf16, #tpu.memory_space<vmem>>, %arg13: memref<1x32xf32, #tpu.memory_space<vmem>>, %arg14: memref<1x32xf32, #tpu.memory_space<vmem>>, %arg15: memref<1x32xf32, #tpu.memory_space<vmem>>, %arg16: memref<32x32xbf16, #tpu.memory_space<vmem>>, %arg17: memref<1x32xf32, #tpu.memory_space<vmem>>, %arg18: memref<16x32xf32, #tpu.memory_space<vmem>>) attributes {dimension_semantics = [#tpu.dimension_semantics<parallel>], iteration_bounds = array<i64: 2>, scalar_prefetch = 0 : i64, scratch_operands = 0 : i64, tpu.core_type = #tpu.core_type<tc>, window_params = [{transform_indices = @transform_0, window_bounds = array<i64: 16, 4>}, {transform_indices = @transform_1, window_bounds = array<i64: 16, 32>}, {pipeline_mode = #tpu.pipeline_mode<synchronous>, transform_indices = @transform_2, window_bounds = array<i64: 4, 16>}, {pipeline_mode = #tpu.pipeline_mode<synchronous>, transform_indices = @transform_3, window_bounds = array<i64: 16, 128>}, {pipeline_mode = #tpu.pipeline_mode<synchronous>, transform_indices = @transform_4, window_bounds = array<i64: 16, 128>}, {pipeline_mode = #tpu.pipeline_mode<synchronous>, transform_indices = @transform_5, window_bounds = array<i64: 4, 128>}, {pipeline_mode = #tpu.pipeline_mode<synchronous>, transform_indices = @transform_6, window_bounds = array<i64: 1, 128>}, {pipeline_mode = #tpu.pipeline_mode<synchronous>, transform_indices = @transform_7, window_bounds = array<i64: 1, 128>}, {pipeline_mode = #tpu.pipeline_mode<synchronous>, transform_indices = @transform_8, window_bounds = array<i64: 1, 128>}, {pipeline_mode = #tpu.pipeline_mode<synchronous>, transform_indices = @transform_9, window_bounds = array<i64: 128, 4>}, {pipeline_mode = #tpu.pipeline_mode<synchronous>, transform_indices = @transform_10, window_bounds = array<i64: 4, 128>}, {pipeline_mode = #tpu.pipeline_mode<synchronous>, transform_indices = @transform_11, window_bounds = array<i64: 128, 32>}, {pipeline_mode = #tpu.pipeline_mode<synchronous>, transform_indices = @transform_12, window_bounds = array<i64: 1, 32>}, {pipeline_mode = #tpu.pipeline_mode<synchronous>, transform_indices = @transform_13, window_bounds = array<i64: 1, 32>}, {pipeline_mode = #tpu.pipeline_mode<synchronous>, transform_indices = @transform_14, window_bounds = array<i64: 1, 32>}, {pipeline_mode = #tpu.pipeline_mode<synchronous>, transform_indices = @transform_15, window_bounds = array<i64: 32, 32>}, {pipeline_mode = #tpu.pipeline_mode<synchronous>, transform_indices = @transform_16, window_bounds = array<i64: 1, 32>}, {transform_indices = @transform_17, window_bounds = array<i64: 16, 32>}]} {
    %c0 = arith.constant 0 : index
    %c0_0 = arith.constant 0 : index
    %0 = vector.load %arg2[%c0, %c0_0] : memref<16x32xf32, #tpu.memory_space<vmem>>, vector<16x32xf32>
    %c0_1 = arith.constant 0 : index
    %c0_2 = arith.constant 0 : index
    %1 = vector.load %arg1[%c0_1, %c0_2] : memref<16x4xf32, #tpu.memory_space<vmem>>, vector<16x4xf32>
    %c0_3 = arith.constant 0 : index
    %c0_4 = arith.constant 0 : index
    %2 = vector.load %arg3[%c0_3, %c0_4] : memref<4x16xf32, #tpu.memory_space<vmem>>, vector<4x16xf32>
    %cst = arith.constant dense<0.000000e+00> : vector<16x16xf32>
    %3 = tpu.matmul %1, %2, %cst {dimension_numbers = #tpu.dot_dimension_numbers<[1], [0], [0], [1], [0, 0, 1, 1], [], []>} : vector<16x4xf32>, vector<4x16xf32>, vector<16x16xf32> -> vector<16x16xf32>
    %4 = math.cos %3 : vector<16x16xf32>
    %5 = arith.truncf %4 : vector<16x16xf32> to vector<16x16xbf16>
    %6 = math.sin %3 : vector<16x16xf32>
    %7 = arith.truncf %6 : vector<16x16xf32> to vector<16x16xbf16>
    %c0_5 = arith.constant 0 : index
    %c0_6 = arith.constant 0 : index
    %8 = vector.load %arg4[%c0_5, %c0_6] : memref<16x128xbf16, #tpu.memory_space<vmem>>, vector<16x128xbf16>
    %cst_7 = arith.constant dense<0.000000e+00> : vector<16x128xf32>
    %9 = tpu.matmul %5, %8, %cst_7 {dimension_numbers = #tpu.dot_dimension_numbers<[1], [0], [0], [1], [0, 0, 1, 1], [], []>} : vector<16x16xbf16>, vector<16x128xbf16>, vector<16x128xf32> -> vector<16x128xf32>
    %c0_8 = arith.constant 0 : index
    %c0_9 = arith.constant 0 : index
    %10 = vector.load %arg5[%c0_8, %c0_9] : memref<16x128xbf16, #tpu.memory_space<vmem>>, vector<16x128xbf16>
    %cst_10 = arith.constant dense<0.000000e+00> : vector<16x128xf32>
    %11 = tpu.matmul %7, %10, %cst_10 {dimension_numbers = #tpu.dot_dimension_numbers<[1], [0], [0], [1], [0, 0, 1, 1], [], []>} : vector<16x16xbf16>, vector<16x128xbf16>, vector<16x128xf32> -> vector<16x128xf32>
    %12 = arith.addf %9, %11 : vector<16x128xf32>
    %c0_11 = arith.constant 0 : index
    %c0_12 = arith.constant 0 : index
    %13 = vector.load %arg6[%c0_11, %c0_12] : memref<4x128xf32, #tpu.memory_space<vmem>>, vector<4x128xf32>
    %cst_13 = arith.constant dense<0.000000e+00> : vector<16x128xf32>
    %14 = tpu.matmul %1, %13, %cst_13 {dimension_numbers = #tpu.dot_dimension_numbers<[1], [0], [0], [1], [0, 0, 1, 1], [], []>} : vector<16x4xf32>, vector<4x128xf32>, vector<16x128xf32> -> vector<16x128xf32>
    %15 = arith.addf %12, %14 : vector<16x128xf32>
    %c0_14 = arith.constant 0 : index
    %c0_15 = arith.constant 0 : index
    %16 = vector.load %arg7[%c0_14, %c0_15] : memref<1x128xf32, #tpu.memory_space<vmem>>, vector<1x128xf32>
    %17 = vector.broadcast %16 : vector<1x128xf32> to vector<16x128xf32>
    %18 = arith.addf %15, %17 : vector<16x128xf32>
    %c0_16 = arith.constant 0 : index
    %c0_17 = arith.constant 0 : index
    %19 = vector.load %arg10[%c0_16, %c0_17] : memref<128x4xf32, #tpu.memory_space<vmem>>, vector<128x4xf32>
    %c0_18 = arith.constant 0 : index
    %c0_19 = arith.constant 0 : index
    %20 = vector.load %arg11[%c0_18, %c0_19] : memref<4x128xf32, #tpu.memory_space<vmem>>, vector<4x128xf32>
    %cst_20 = arith.constant dense<0.000000e+00> : vector<16x4xf32>
    %21 = tpu.matmul %18, %19, %cst_20 {dimension_numbers = #tpu.dot_dimension_numbers<[1], [0], [0], [1], [0, 0, 1, 1], [], []>} : vector<16x128xf32>, vector<128x4xf32>, vector<16x4xf32> -> vector<16x4xf32>
    %cst_21 = arith.constant dense<0.000000e+00> : vector<16x128xf32>
    %22 = tpu.matmul %21, %20, %cst_21 {dimension_numbers = #tpu.dot_dimension_numbers<[1], [0], [0], [1], [0, 0, 1, 1], [], []>} : vector<16x4xf32>, vector<4x128xf32>, vector<16x128xf32> -> vector<16x128xf32>
    %23 = arith.subf %18, %22 : vector<16x128xf32>
    %24 = arith.mulf %23, %23 : vector<16x128xf32>
    %cst_22 = arith.constant dense<0.000000e+00> : vector<16x4xf32>
    %25 = tpu.matmul %24, %19, %cst_22 {dimension_numbers = #tpu.dot_dimension_numbers<[1], [0], [0], [1], [0, 0, 1, 1], [], []>} : vector<16x128xf32>, vector<128x4xf32>, vector<16x4xf32> -> vector<16x4xf32>
    %cst_23 = arith.constant dense<0.000000e+00> : vector<16x128xf32>
    %26 = tpu.matmul %25, %20, %cst_23 {dimension_numbers = #tpu.dot_dimension_numbers<[1], [0], [0], [1], [0, 0, 1, 1], [], []>} : vector<16x4xf32>, vector<4x128xf32>, vector<16x128xf32> -> vector<16x128xf32>
    %cst_24 = arith.constant 9.99999974E-6 : f32
    %27 = vector.broadcast %cst_24 : f32 to vector<16x128xf32>
    %28 = arith.addf %26, %27 : vector<16x128xf32>
    %29 = math.rsqrt %28 : vector<16x128xf32>
    %30 = arith.mulf %23, %29 : vector<16x128xf32>
    %c0_25 = arith.constant 0 : index
    %c0_26 = arith.constant 0 : index
    %31 = vector.load %arg8[%c0_25, %c0_26] : memref<1x128xf32, #tpu.memory_space<vmem>>, vector<1x128xf32>
    %32 = vector.broadcast %31 : vector<1x128xf32> to vector<16x128xf32>
    %33 = arith.mulf %30, %32 : vector<16x128xf32>
    %c0_27 = arith.constant 0 : index
    %c0_28 = arith.constant 0 : index
    %34 = vector.load %arg9[%c0_27, %c0_28] : memref<1x128xf32, #tpu.memory_space<vmem>>, vector<1x128xf32>
    %35 = vector.broadcast %34 : vector<1x128xf32> to vector<16x128xf32>
    %36 = arith.addf %33, %35 : vector<16x128xf32>
    %cst_29 = arith.constant 0.000000e+00 : f32
    %37 = vector.broadcast %cst_29 : f32 to vector<16x128xf32>
    %38 = arith.maximumf %36, %37 : vector<16x128xf32>
    %39 = arith.truncf %38 : vector<16x128xf32> to vector<16x128xbf16>
    %c0_30 = arith.constant 0 : index
    %c0_31 = arith.constant 0 : index
    %40 = vector.load %arg12[%c0_30, %c0_31] : memref<128x32xbf16, #tpu.memory_space<vmem>>, vector<128x32xbf16>
    %cst_32 = arith.constant dense<0.000000e+00> : vector<16x32xf32>
    %41 = tpu.matmul %39, %40, %cst_32 {dimension_numbers = #tpu.dot_dimension_numbers<[1], [0], [0], [1], [0, 0, 1, 1], [], []>} : vector<16x128xbf16>, vector<128x32xbf16>, vector<16x32xf32> -> vector<16x32xf32>
    %c0_33 = arith.constant 0 : index
    %c0_34 = arith.constant 0 : index
    %42 = vector.load %arg13[%c0_33, %c0_34] : memref<1x32xf32, #tpu.memory_space<vmem>>, vector<1x32xf32>
    %43 = vector.broadcast %42 : vector<1x32xf32> to vector<16x32xf32>
    %44 = arith.addf %41, %43 : vector<16x32xf32>
    %45 = arith.addf %44, %0 : vector<16x32xf32>
    %c0_35 = arith.constant 0 : index
    %c0_36 = arith.constant 0 : index
    %46 = vector.load %arg14[%c0_35, %c0_36] : memref<1x32xf32, #tpu.memory_space<vmem>>, vector<1x32xf32>
    %c0_37 = arith.constant 0 : index
    %c0_38 = arith.constant 0 : index
    %47 = vector.load %arg15[%c0_37, %c0_38] : memref<1x32xf32, #tpu.memory_space<vmem>>, vector<1x32xf32>
    %cst_39 = arith.constant dense<0.000000e+00> : vector<16xf32>
    %48 = vector.multi_reduction <add>, %45, %cst_39 [1] : vector<16x32xf32> to vector<16xf32>
    %49 = vector.shape_cast %48 : vector<16xf32> to vector<16x1xf32>
    %cst_40 = arith.constant 3.200000e+01 : f32
    %50 = vector.broadcast %cst_40 : f32 to vector<16x1xf32>
    %51 = arith.divf %49, %50 : vector<16x1xf32>
    %52 = vector.broadcast %51 : vector<16x1xf32> to vector<16x32xf32>
    %53 = arith.subf %45, %52 : vector<16x32xf32>
    %54 = arith.mulf %53, %53 : vector<16x32xf32>
    %cst_41 = arith.constant dense<0.000000e+00> : vector<16xf32>
    %55 = vector.multi_reduction <add>, %54, %cst_41 [1] : vector<16x32xf32> to vector<16xf32>
    %56 = vector.shape_cast %55 : vector<16xf32> to vector<16x1xf32>
    %cst_42 = arith.constant 3.200000e+01 : f32
    %57 = vector.broadcast %cst_42 : f32 to vector<16x1xf32>
    %58 = arith.divf %56, %57 : vector<16x1xf32>
    %59 = vector.broadcast %51 : vector<16x1xf32> to vector<16x32xf32>
    %60 = arith.subf %45, %59 : vector<16x32xf32>
    %cst_43 = arith.constant 9.99999974E-6 : f32
    %61 = vector.broadcast %cst_43 : f32 to vector<16x1xf32>
    %62 = arith.addf %58, %61 : vector<16x1xf32>
    %63 = math.rsqrt %62 : vector<16x1xf32>
    %64 = vector.broadcast %63 : vector<16x1xf32> to vector<16x32xf32>
    %65 = arith.mulf %60, %64 : vector<16x32xf32>
    %66 = vector.broadcast %46 : vector<1x32xf32> to vector<16x32xf32>
    %67 = arith.mulf %65, %66 : vector<16x32xf32>
    %68 = vector.broadcast %47 : vector<1x32xf32> to vector<16x32xf32>
    %69 = arith.addf %67, %68 : vector<16x32xf32>
    %cst_44 = arith.constant 0.000000e+00 : f32
    %70 = vector.broadcast %cst_44 : f32 to vector<16x32xf32>
    %71 = arith.maximumf %69, %70 : vector<16x32xf32>
    %72 = arith.truncf %71 : vector<16x32xf32> to vector<16x32xbf16>
    %c0_45 = arith.constant 0 : index
    %c0_46 = arith.constant 0 : index
    %73 = vector.load %arg16[%c0_45, %c0_46] : memref<32x32xbf16, #tpu.memory_space<vmem>>, vector<32x32xbf16>
    %cst_47 = arith.constant dense<0.000000e+00> : vector<16x32xf32>
    %74 = tpu.matmul %72, %73, %cst_47 {dimension_numbers = #tpu.dot_dimension_numbers<[1], [0], [0], [1], [0, 0, 1, 1], [], []>} : vector<16x32xbf16>, vector<32x32xbf16>, vector<16x32xf32> -> vector<16x32xf32>
    %c0_48 = arith.constant 0 : index
    %c0_49 = arith.constant 0 : index
    %75 = vector.load %arg17[%c0_48, %c0_49] : memref<1x32xf32, #tpu.memory_space<vmem>>, vector<1x32xf32>
    %76 = vector.broadcast %75 : vector<1x32xf32> to vector<16x32xf32>
    %77 = arith.addf %74, %76 : vector<16x32xf32>
    %c0_50 = arith.constant 0 : index
    %c0_51 = arith.constant 0 : index
    %78 = vector.load %arg18[%c0_50, %c0_51] : memref<16x32xf32, #tpu.memory_space<vmem>>, vector<16x32xf32>
    tpu.vector_store %arg18[%c0_50, %c0_51], %77 {strides = array<i32>} : memref<16x32xf32, #tpu.memory_space<vmem>>, vector<16x32xf32>,
    return
  }
  func.func @transform_0(%arg0: i32) -> (i32, i32) {
    %c0_i32 = arith.constant 0 : i32
    %c0_i32_0 = arith.constant 0 : i32
    return %arg0, %c0_i32 : i32, i32
  }
  func.func @transform_1(%arg0: i32) -> (i32, i32) {
    %c0_i32 = arith.constant 0 : i32
    %c0_i32_0 = arith.constant 0 : i32
    return %arg0, %c0_i32 : i32, i32
  }
  func.func @transform_2(%arg0: i32) -> (i32, i32) {
    %c0_i32 = arith.constant 0 : i32
    %c0_i32_0 = arith.constant 0 : i32
    %c0_i32_1 = arith.constant 0 : i32
    return %c0_i32, %c0_i32_0 : i32, i32
  }
  func.func @transform_3(%arg0: i32) -> (i32, i32) {
    %c0_i32 = arith.constant 0 : i32
    %c0_i32_0 = arith.constant 0 : i32
    %c0_i32_1 = arith.constant 0 : i32
    return %c0_i32, %c0_i32_0 : i32, i32
  }
  func.func @transform_4(%arg0: i32) -> (i32, i32) {
    %c0_i32 = arith.constant 0 : i32
    %c0_i32_0 = arith.constant 0 : i32
    %c0_i32_1 = arith.constant 0 : i32
    return %c0_i32, %c0_i32_0 : i32, i32
  }
  func.func @transform_5(%arg0: i32) -> (i32, i32) {
    %c0_i32 = arith.constant 0 : i32
    %c0_i32_0 = arith.constant 0 : i32
    %c0_i32_1 = arith.constant 0 : i32
    return %c0_i32, %c0_i32_0 : i32, i32
  }
  func.func @transform_6(%arg0: i32) -> (i32, i32) {
    %c0_i32 = arith.constant 0 : i32
    %c0_i32_0 = arith.constant 0 : i32
    %c0_i32_1 = arith.constant 0 : i32
    return %c0_i32, %c0_i32_0 : i32, i32
  }
  func.func @transform_7(%arg0: i32) -> (i32, i32) {
    %c0_i32 = arith.constant 0 : i32
    %c0_i32_0 = arith.constant 0 : i32
    %c0_i32_1 = arith.constant 0 : i32
    return %c0_i32, %c0_i32_0 : i32, i32
  }
  func.func @transform_8(%arg0: i32) -> (i32, i32) {
    %c0_i32 = arith.constant 0 : i32
    %c0_i32_0 = arith.constant 0 : i32
    %c0_i32_1 = arith.constant 0 : i32
    return %c0_i32, %c0_i32_0 : i32, i32
  }
  func.func @transform_9(%arg0: i32) -> (i32, i32) {
    %c0_i32 = arith.constant 0 : i32
    %c0_i32_0 = arith.constant 0 : i32
    %c0_i32_1 = arith.constant 0 : i32
    return %c0_i32, %c0_i32_0 : i32, i32
  }
  func.func @transform_10(%arg0: i32) -> (i32, i32) {
    %c0_i32 = arith.constant 0 : i32
    %c0_i32_0 = arith.constant 0 : i32
    %c0_i32_1 = arith.constant 0 : i32
    return %c0_i32, %c0_i32_0 : i32, i32
  }
  func.func @transform_11(%arg0: i32) -> (i32, i32) {
    %c0_i32 = arith.constant 0 : i32
    %c0_i32_0 = arith.constant 0 : i32
    %c0_i32_1 = arith.constant 0 : i32
    return %c0_i32, %c0_i32_0 : i32, i32
  }
  func.func @transform_12(%arg0: i32) -> (i32, i32) {
    %c0_i32 = arith.constant 0 : i32
    %c0_i32_0 = arith.constant 0 : i32
    %c0_i32_1 = arith.constant 0 : i32
    return %c0_i32, %c0_i32_0 : i32, i32
  }
  func.func @transform_13(%arg0: i32) -> (i32, i32) {
    %c0_i32 = arith.constant 0 : i32
    %c0_i32_0 = arith.constant 0 : i32
    %c0_i32_1 = arith.constant 0 : i32
    return %c0_i32, %c0_i32_0 : i32, i32
  }
  func.func @transform_14(%arg0: i32) -> (i32, i32) {
    %c0_i32 = arith.constant 0 : i32
    %c0_i32_0 = arith.constant 0 : i32
    %c0_i32_1 = arith.constant 0 : i32
    return %c0_i32, %c0_i32_0 : i32, i32
  }
  func.func @transform_15(%arg0: i32) -> (i32, i32) {
    %c0_i32 = arith.constant 0 : i32
    %c0_i32_0 = arith.constant 0 : i32
    %c0_i32_1 = arith.constant 0 : i32
    return %c0_i32, %c0_i32_0 : i32, i32
  }
  func.func @transform_16(%arg0: i32) -> (i32, i32) {
    %c0_i32 = arith.constant 0 : i32
    %c0_i32_0 = arith.constant 0 : i32
    %c0_i32_1 = arith.constant 0 : i32
    return %c0_i32, %c0_i32_0 : i32, i32
  }
  func.func @transform_17(%arg0: i32) -> (i32, i32) {
    %c0_i32 = arith.constant 0 : i32
    %c0_i32_0 = arith.constant 0 : i32
    return %arg0, %c0_i32 : i32, i32
  }
}

</mosaic_0001>

<llo_original>
// kernel: tpu_custom_call.1
$region0: #{tpu_custom_call.1}
  #allocation0 [shape = 'u32[]', space=smem, size = 0x4, offset = 0x4, fixed_abs, tag = 'smem constant byte address 0x4 - core index']
  #allocation1 [shape = 'u32[72,128]{1,0:T(1,128)}', space=vmem, size = 0x9000, scoped, tag = 'internal scratch']
  %s0 = inlined_call_operand.vmem [shape: f32[32,4], index: 0, kind: input, shape index: {}]
  %s1 = inlined_call_operand.vmem [shape: f32[32,32], index: 1, kind: input, shape index: {}]
  %s2 = inlined_call_operand.vmem [shape: f32[4,16], index: 2, kind: input, shape index: {}]
  %s3 = inlined_call_operand.vmem [shape: bf16[16,128], index: 3, kind: input, shape index: {}]
  %s4 = inlined_call_operand.vmem [shape: bf16[16,128], index: 4, kind: input, shape index: {}]
  %s5 = inlined_call_operand.vmem [shape: f32[4,128], index: 5, kind: input, shape index: {}]
  %s6 = inlined_call_operand.vmem [shape: f32[1,128], index: 6, kind: input, shape index: {}]
  %s7 = inlined_call_operand.vmem [shape: f32[1,128], index: 7, kind: input, shape index: {}]
  %s8 = inlined_call_operand.vmem [shape: f32[1,128], index: 8, kind: input, shape index: {}]
  %s9 = inlined_call_operand.vmem [shape: f32[128,4], index: 9, kind: input, shape index: {}]
  %s10 = inlined_call_operand.vmem [shape: f32[4,128], index: 10, kind: input, shape index: {}]
  %s11 = inlined_call_operand.vmem [shape: bf16[128,32], index: 11, kind: input, shape index: {}]
  %s12 = inlined_call_operand.vmem [shape: f32[1,32], index: 12, kind: input, shape index: {}]
  %s13 = inlined_call_operand.vmem [shape: f32[1,32], index: 13, kind: input, shape index: {}]
  %s14 = inlined_call_operand.vmem [shape: f32[1,32], index: 14, kind: input, shape index: {}]
  %s15 = inlined_call_operand.vmem [shape: bf16[32,32], index: 15, kind: input, shape index: {}]
  %s16 = inlined_call_operand.vmem [shape: f32[1,32], index: 16, kind: input, shape index: {}]
  %s17 = inlined_call_operand.hbm [shape: f32[32,32], index: 17, kind: output, shape index: {}]
  %s18 = sld [smem:[#allocation0]]
  $region101: #{tpu_custom_call.1} parent=0
    _
  %s20 = ssub.s32 1, %s18
  %s21 = scalar_select 0, %s20, %s18
  $region1: #{tpu_custom_call.1} parent=0
    #allocation2 [shape = 'u8[16384]{0}', space=vmem, size = 0x4000, scoped, tag = 'output window, operand 0']
    #allocation3 [shape = 's32[2]{0}', space=sflag, size = 0x8, scoped, tag = 'scoped memory for tpu_custom_call.1']
    %22 = vsyncpa [#allocation3], 0
    %s23 = scalar_lea.sflag [#allocation3], 1
    %24 = vsyncpa %s23, 0
    loop: start=0, step=1, limit=4
    $region2: #{tpu_custom_call.1} parent=1 // loop_pre_header
      _
    $region3: #{tpu_custom_call.1} parent=1 // loop_header
      %s26 = sphi 0, %s30
      %p27 = scmp.ge.s32.totalorder %s26, 4
      %s36 = sphi 0, %s38
      %s39 = sphi 0, %s36
      %s40 = sphi 0, %s39
      %s56 = sphi 0, %s40
      %s62 = sphi 0, %s64
      %s65 = sphi 0, %s62
      %s66 = sphi 0, %s65
      %s82 = sphi 0, %s66
      %s86 = sphi 0, %s86
      %s88 = sphi 0, %s86
      %s89 = sphi 0, %s88
      %s103 = sphi 0, %s89
      %s107 = sphi 0, %s107
      %s109 = sphi 0, %s107
      %s110 = sphi 0, %s109
      %s124 = sphi 0, %s110
      %s128 = sphi 0, %s128
      %s130 = sphi 0, %s128
      %s131 = sphi 0, %s130
      %s145 = sphi 0, %s131
      %s149 = sphi 0, %s149
      %s151 = sphi 0, %s149
      %s152 = sphi 0, %s151
      %s166 = sphi 0, %s152
      %s170 = sphi 0, %s170
      %s172 = sphi 0, %s170
      %s173 = sphi 0, %s172
      %s187 = sphi 0, %s173
      %s191 = sphi 0, %s191
      %s193 = sphi 0, %s191
      %s194 = sphi 0, %s193
      %s208 = sphi 0, %s194
      %s212 = sphi 0, %s212
      %s214 = sphi 0, %s212
      %s215 = sphi 0, %s214
      %s229 = sphi 0, %s215
      %s233 = sphi 0, %s233
      %s235 = sphi 0, %s233
      %s236 = sphi 0, %s235
      %s250 = sphi 0, %s236
      %s254 = sphi 0, %s254
      %s256 = sphi 0, %s254
      %s257 = sphi 0, %s256
      %s271 = sphi 0, %s257
      %s275 = sphi 0, %s275
      %s277 = sphi 0, %s275
      %s278 = sphi 0, %s277
      %s292 = sphi 0, %s278
      %s296 = sphi 0, %s296
      %s298 = sphi 0, %s296
      %s299 = sphi 0, %s298
      %s313 = sphi 0, %s299
      %s317 = sphi 0, %s317
      %s319 = sphi 0, %s317
      %s320 = sphi 0, %s319
      %s334 = sphi 0, %s320
      %s338 = sphi 0, %s338
      %s340 = sphi 0, %s338
      %s341 = sphi 0, %s340
      %s355 = sphi 0, %s341
      %s359 = sphi 0, %s359
      %s361 = sphi 0, %s359
      %s362 = sphi 0, %s361
      %s376 = sphi 0, %s362
      %s380 = sphi 0, %s380
      %s382 = sphi 0, %s380
      %s383 = sphi 0, %s382
      %s397 = sphi 0, %s383
      %s403 = sphi 0, %s405
      %s406 = sphi 0, %s403
      %s407 = sphi 0, %s406
      %s423 = sphi 0, %s407
    $region4: #{tpu_custom_call.1} parent=1 // loop_header_branch
      %29 = sbr.rel (%p27) target = $region8
    $region5: #{tpu_custom_call.1} parent=1 // loop_body
      %s31 = ssub.s32 %s26, 1
      %s32 = ssub.s32 %s26, 2
      %s33 = sadd.s32 %s26, 1
      %s34 = ssub.s32 %s26, %s33
      %p35 = scmp.eq.s32.totalorder %s34, 0
      %s37 = sadd.s32 %s36, 1
      %s38 = scalar_select %p35, %s36, %s37
      %p41 = pneg %p35
      %p42 = scmp.eq.s32.totalorder %s26, 1
      %p43 = por %p41, %p42
      %p44 = scmp.ne.s32.totalorder %s36, %s39
      %p45 = scmp.eq.s32.totalorder %s26, 0
      %p46 = por %p44, %p45
      %p47 = scmp.ne.s32.totalorder %s36, %s39
      %p48 = scmp.eq.s32.totalorder %s31, 1
      %p49 = por %p47, %p48
      %p50 = scmp.ne.s32.totalorder %s39, %s40
      %p51 = scmp.eq.s32.totalorder %s31, 0
      %p52 = por %p50, %p51
      %p53 = scmp.ne.s32.totalorder %s39, %s40
      %p54 = scmp.eq.s32.totalorder %s32, 1
      %p55 = por %p53, %p54
      %p57 = scmp.ne.s32.totalorder %s40, %s56
      %p58 = scmp.eq.s32.totalorder %s32, 0
      %p59 = por %p57, %p58
      %s60 = ssub.s32 %s26, %s33
      %p61 = scmp.eq.s32.totalorder %s60, 0
      %s63 = sadd.s32 %s62, 1
      %s64 = scalar_select %p61, %s62, %s63
      %p67 = pneg %p61
      %p68 = scmp.eq.s32.totalorder %s26, 1
      %p69 = por %p67, %p68
      %p70 = scmp.ne.s32.totalorder %s62, %s65
      %p71 = scmp.eq.s32.totalorder %s26, 0
      %p72 = por %p70, %p71
      %p73 = scmp.ne.s32.totalorder %s62, %s65
      %p74 = scmp.eq.s32.totalorder %s31, 1
      %p75 = por %p73, %p74
      %p76 = scmp.ne.s32.totalorder %s65, %s66
      %p77 = scmp.eq.s32.totalorder %s31, 0
      %p78 = por %p76, %p77
      %p79 = scmp.ne.s32.totalorder %s65, %s66
      %p80 = scmp.eq.s32.totalorder %s32, 1
      %p81 = por %p79, %p80
      %p83 = scmp.ne.s32.totalorder %s66, %s82
      %p84 = scmp.eq.s32.totalorder %s32, 0
      %p85 = por %p83, %p84
      %s87 = sadd.s32 %s86, 1
      %p90 = scmp.eq.s32.totalorder %s26, 1
      %p91 = scmp.ne.s32.totalorder %s86, %s88
      %p92 = scmp.eq.s32.totalorder %s26, 0
      %p93 = por %p91, %p92
      %p94 = scmp.ne.s32.totalorder %s86, %s88
      %p95 = scmp.eq.s32.totalorder %s31, 1
      %p96 = por %p94, %p95
      %p97 = scmp.ne.s32.totalorder %s88, %s89
      %p98 = scmp.eq.s32.totalorder %s31, 0
      %p99 = por %p97, %p98
      %p100 = scmp.ne.s32.totalorder %s88, %s89
      %p101 = scmp.eq.s32.totalorder %s32, 1
      %p102 = por %p100, %p101
      %p104 = scmp.ne.s32.totalorder %s89, %s103
      %p105 = scmp.eq.s32.totalorder %s32, 0
      %p106 = por %p104, %p105
      %s108 = sadd.s32 %s107, 1
      %p111 = scmp.eq.s32.totalorder %s26, 1
      %p112 = scmp.ne.s32.totalorder %s107, %s109
      %p113 = scmp.eq.s32.totalorder %s26, 0
      %p114 = por %p112, %p113
      %p115 = scmp.ne.s32.totalorder %s107, %s109
      %p116 = scmp.eq.s32.totalorder %s31, 1
      %p117 = por %p115, %p116
      %p118 = scmp.ne.s32.totalorder %s109, %s110
      %p119 = scmp.eq.s32.totalorder %s31, 0
      %p120 = por %p118, %p119
      %p121 = scmp.ne.s32.totalorder %s109, %s110
      %p122 = scmp.eq.s32.totalorder %s32, 1
      %p123 = por %p121, %p122
      %p125 = scmp.ne.s32.totalorder %s110, %s124
      %p126 = scmp.eq.s32.totalorder %s32, 0
      %p127 = por %p125, %p126
      %s129 = sadd.s32 %s128, 1
      %p132 = scmp.eq.s32.totalorder %s26, 1
      %p133 = scmp.ne.s32.totalorder %s128, %s130
      %p134 = scmp.eq.s32.totalorder %s26, 0
      %p135 = por %p133, %p134
      %p136 = scmp.ne.s32.totalorder %s128, %s130
      %p137 = scmp.eq.s32.totalorder %s31, 1
      %p138 = por %p136, %p137
      %p139 = scmp.ne.s32.totalorder %s130, %s131
      %p140 = scmp.eq.s32.totalorder %s31, 0
      %p141 = por %p139, %p140
      %p142 = scmp.ne.s32.totalorder %s130, %s131
      %p143 = scmp.eq.s32.totalorder %s32, 1
      %p144 = por %p142, %p143
      %p146 = scmp.ne.s32.totalorder %s131, %s145
      %p147 = scmp.eq.s32.totalorder %s32, 0
      %p148 = por %p146, %p147
      %s150 = sadd.s32 %s149, 1
      %p153 = scmp.eq.s32.totalorder %s26, 1
      %p154 = scmp.ne.s32.totalorder %s149, %s151
      %p155 = scmp.eq.s32.totalorder %s26, 0
      %p156 = por %p154, %p155
      %p157 = scmp.ne.s32.totalorder %s149, %s151
      %p158 = scmp.eq.s32.totalorder %s31, 1
      %p159 = por %p157, %p158
      %p160 = scmp.ne.s32.totalorder %s151, %s152
      %p161 = scmp.eq.s32.totalorder %s31, 0
      %p162 = por %p160, %p161
      %p163 = scmp.ne.s32.totalorder %s151, %s152
      %p164 = scmp.eq.s32.totalorder %s32, 1
      %p165 = por %p163, %p164
      %p167 = scmp.ne.s32.totalorder %s152, %s166
      %p168 = scmp.eq.s32.totalorder %s32, 0
      %p169 = por %p167, %p168
      %s171 = sadd.s32 %s170, 1
      %p174 = scmp.eq.s32.totalorder %s26, 1
      %p175 = scmp.ne.s32.totalorder %s170, %s172
      %p176 = scmp.eq.s32.totalorder %s26, 0
      %p177 = por %p175, %p176
      %p178 = scmp.ne.s32.totalorder %s170, %s172
      %p179 = scmp.eq.s32.totalorder %s31, 1
      %p180 = por %p178, %p179
      %p181 = scmp.ne.s32.totalorder %s172, %s173
      %p182 = scmp.eq.s32.totalorder %s31, 0
      %p183 = por %p181, %p182
      %p184 = scmp.ne.s32.totalorder %s172, %s173
      %p185 = scmp.eq.s32.totalorder %s32, 1
      %p186 = por %p184, %p185
      %p188 = scmp.ne.s32.totalorder %s173, %s187
      %p189 = scmp.eq.s32.totalorder %s32, 0
      %p190 = por %p188, %p189
      %s192 = sadd.s32 %s191, 1
      %p195 = scmp.eq.s32.totalorder %s26, 1
      %p196 = scmp.ne.s32.totalorder %s191, %s193
      %p197 = scmp.eq.s32.totalorder %s26, 0
      %p198 = por %p196, %p197
      %p199 = scmp.ne.s32.totalorder %s191, %s193
      %p200 = scmp.eq.s32.totalorder %s31, 1
      %p201 = por %p199, %p200
      %p202 = scmp.ne.s32.totalorder %s193, %s194
      %p203 = scmp.eq.s32.totalorder %s31, 0
      %p204 = por %p202, %p203
      %p205 = scmp.ne.s32.totalorder %s193, %s194
      %p206 = scmp.eq.s32.totalorder %s32, 1
      %p207 = por %p205, %p206
      %p209 = scmp.ne.s32.totalorder %s194, %s208
      %p210 = scmp.eq.s32.totalorder %s32, 0
      %p211 = por %p209, %p210
      %s213 = sadd.s32 %s212, 1
      %p216 = scmp.eq.s32.totalorder %s26, 1
      %p217 = scmp.ne.s32.totalorder %s212, %s214
      %p218 = scmp.eq.s32.totalorder %s26, 0
      %p219 = por %p217, %p218
      %p220 = scmp.ne.s32.totalorder %s212, %s214
      %p221 = scmp.eq.s32.totalorder %s31, 1
      %p222 = por %p220, %p221
      %p223 = scmp.ne.s32.totalorder %s214, %s215
      %p224 = scmp.eq.s32.totalorder %s31, 0
      %p225 = por %p223, %p224
      %p226 = scmp.ne.s32.totalorder %s214, %s215
      %p227 = scmp.eq.s32.totalorder %s32, 1
      %p228 = por %p226, %p227
      %p230 = scmp.ne.s32.totalorder %s215, %s229
      %p231 = scmp.eq.s32.totalorder %s32, 0
      %p232 = por %p230, %p231
      %s234 = sadd.s32 %s233, 1
      %p237 = scmp.eq.s32.totalorder %s26, 1
      %p238 = scmp.ne.s32.totalorder %s233, %s235
      %p239 = scmp.eq.s32.totalorder %s26, 0
      %p240 = por %p238, %p239
      %p241 = scmp.ne.s32.totalorder %s233, %s235
      %p242 = scmp.eq.s32.totalorder %s31, 1
      %p243 = por %p241, %p242
      %p244 = scmp.ne.s32.totalorder %s235, %s236
      %p245 = scmp.eq.s32.totalorder %s31, 0
      %p246 = por %p244, %p245
      %p247 = scmp.ne.s32.totalorder %s235, %s236
      %p248 = scmp.eq.s32.totalorder %s32, 1
      %p249 = por %p247, %p248
      %p251 = scmp.ne.s32.totalorder %s236, %s250
      %p252 = scmp.eq.s32.totalorder %s32, 0
      %p253 = por %p251, %p252
      %s255 = sadd.s32 %s254, 1
      %p258 = scmp.eq.s32.totalorder %s26, 1
      %p259 = scmp.ne.s32.totalorder %s254, %s256
      %p260 = scmp.eq.s32.totalorder %s26, 0
      %p261 = por %p259, %p260
      %p262 = scmp.ne.s32.totalorder %s254, %s256
      %p263 = scmp.eq.s32.totalorder %s31, 1
      %p264 = por %p262, %p263
      %p265 = scmp.ne.s32.totalorder %s256, %s257
      %p266 = scmp.eq.s32.totalorder %s31, 0
      %p267 = por %p265, %p266
      %p268 = scmp.ne.s32.totalorder %s256, %s257
      %p269 = scmp.eq.s32.totalorder %s32, 1
      %p270 = por %p268, %p269
      %p272 = scmp.ne.s32.totalorder %s257, %s271
      %p273 = scmp.eq.s32.totalorder %s32, 0
      %p274 = por %p272, %p273
      %s276 = sadd.s32 %s275, 1
      %p279 = scmp.eq.s32.totalorder %s26, 1
      %p280 = scmp.ne.s32.totalorder %s275, %s277
      %p281 = scmp.eq.s32.totalorder %s26, 0
      %p282 = por %p280, %p281
      %p283 = scmp.ne.s32.totalorder %s275, %s277
      %p284 = scmp.eq.s32.totalorder %s31, 1
      %p285 = por %p283, %p284
      %p286 = scmp.ne.s32.totalorder %s277, %s278
      %p287 = scmp.eq.s32.totalorder %s31, 0
      %p288 = por %p286, %p287
      %p289 = scmp.ne.s32.totalorder %s277, %s278
      %p290 = scmp.eq.s32.totalorder %s32, 1
      %p291 = por %p289, %p290
      %p293 = scmp.ne.s32.totalorder %s278, %s292
      %p294 = scmp.eq.s32.totalorder %s32, 0
      %p295 = por %p293, %p294
      %s297 = sadd.s32 %s296, 1
      %p300 = scmp.eq.s32.totalorder %s26, 1
      %p301 = scmp.ne.s32.totalorder %s296, %s298
      %p302 = scmp.eq.s32.totalorder %s26, 0
      %p303 = por %p301, %p302
      %p304 = scmp.ne.s32.totalorder %s296, %s298
      %p305 = scmp.eq.s32.totalorder %s31, 1
      %p306 = por %p304, %p305
      %p307 = scmp.ne.s32.totalorder %s298, %s299
      %p308 = scmp.eq.s32.totalorder %s31, 0
      %p309 = por %p307, %p308
      %p310 = scmp.ne.s32.totalorder %s298, %s299
      %p311 = scmp.eq.s32.totalorder %s32, 1
      %p312 = por %p310, %p311
      %p314 = scmp.ne.s32.totalorder %s299, %s313
      %p315 = scmp.eq.s32.totalorder %s32, 0
      %p316 = por %p314, %p315
      %s318 = sadd.s32 %s317, 1
      %p321 = scmp.eq.s32.totalorder %s26, 1
      %p322 = scmp.ne.s32.totalorder %s317, %s319
      %p323 = scmp.eq.s32.totalorder %s26, 0
      %p324 = por %p322, %p323
      %p325 = scmp.ne.s32.totalorder %s317, %s319
      %p326 = scmp.eq.s32.totalorder %s31, 1
      %p327 = por %p325, %p326
      %p328 = scmp.ne.s32.totalorder %s319, %s320
      %p329 = scmp.eq.s32.totalorder %s31, 0
      %p330 = por %p328, %p329
      %p331 = scmp.ne.s32.totalorder %s319, %s320
      %p332 = scmp.eq.s32.totalorder %s32, 1
      %p333 = por %p331, %p332
      %p335 = scmp.ne.s32.totalorder %s320, %s334
      %p336 = scmp.eq.s32.totalorder %s32, 0
      %p337 = por %p335, %p336
      %s339 = sadd.s32 %s338, 1
      %p342 = scmp.eq.s32.totalorder %s26, 1
      %p343 = scmp.ne.s32.totalorder %s338, %s340
      %p344 = scmp.eq.s32.totalorder %s26, 0
      %p345 = por %p343, %p344
      %p346 = scmp.ne.s32.totalorder %s338, %s340
      %p347 = scmp.eq.s32.totalorder %s31, 1
      %p348 = por %p346, %p347
      %p349 = scmp.ne.s32.totalorder %s340, %s341
      %p350 = scmp.eq.s32.totalorder %s31, 0
      %p351 = por %p349, %p350
      %p352 = scmp.ne.s32.totalorder %s340, %s341
      %p353 = scmp.eq.s32.totalorder %s32, 1
      %p354 = por %p352, %p353
      %p356 = scmp.ne.s32.totalorder %s341, %s355
      %p357 = scmp.eq.s32.totalorder %s32, 0
      %p358 = por %p356, %p357
      %s360 = sadd.s32 %s359, 1
      %p363 = scmp.eq.s32.totalorder %s26, 1
      %p364 = scmp.ne.s32.totalorder %s359, %s361
      %p365 = scmp.eq.s32.totalorder %s26, 0
      %p366 = por %p364, %p365
      %p367 = scmp.ne.s32.totalorder %s359, %s361
      %p368 = scmp.eq.s32.totalorder %s31, 1
      %p369 = por %p367, %p368
      %p370 = scmp.ne.s32.totalorder %s361, %s362
      %p371 = scmp.eq.s32.totalorder %s31, 0
      %p372 = por %p370, %p371
      %p373 = scmp.ne.s32.totalorder %s361, %s362
      %p374 = scmp.eq.s32.totalorder %s32, 1
      %p375 = por %p373, %p374
      %p377 = scmp.ne.s32.totalorder %s362, %s376
      %p378 = scmp.eq.s32.totalorder %s32, 0
      %p379 = por %p377, %p378
      %s381 = sadd.s32 %s380, 1
      %p384 = scmp.eq.s32.totalorder %s26, 1
      %p385 = scmp.ne.s32.totalorder %s380, %s382
      %p386 = scmp.eq.s32.totalorder %s26, 0
      %p387 = por %p385, %p386
      %p388 = scmp.ne.s32.totalorder %s380, %s382
      %p389 = scmp.eq.s32.totalorder %s31, 1
      %p390 = por %p388, %p389
      %p391 = scmp.ne.s32.totalorder %s382, %s383
      %p392 = scmp.eq.s32.totalorder %s31, 0
      %p393 = por %p391, %p392
      %p394 = scmp.ne.s32.totalorder %s382, %s383
      %p395 = scmp.eq.s32.totalorder %s32, 1
      %p396 = por %p394, %p395
      %p398 = scmp.ne.s32.totalorder %s383, %s397
      %p399 = scmp.eq.s32.totalorder %s32, 0
      %p400 = por %p398, %p399
      %s401 = ssub.s32 %s26, %s33
      %p402 = scmp.eq.s32.totalorder %s401, 0
      %s404 = sadd.s32 %s403, 1
      %s405 = scalar_select %p402, %s403, %s404
      %p408 = pneg %p402
      %p409 = scmp.eq.s32.totalorder %s26, 1
      %p410 = por %p408, %p409
      %p411 = scmp.ne.s32.totalorder %s403, %s406
      %p412 = scmp.eq.s32.totalorder %s26, 0
      %p413 = por %p411, %p412
      %p414 = scmp.ne.s32.totalorder %s403, %s406
      %p415 = scmp.eq.s32.totalorder %s31, 1
      %p416 = por %p414, %p415
      %p417 = scmp.ne.s32.totalorder %s406, %s407
      %p418 = scmp.eq.s32.totalorder %s31, 0
      %p419 = por %p417, %p418
      %p420 = scmp.ne.s32.totalorder %s406, %s407
      %p421 = scmp.eq.s32.totalorder %s32, 1
      %p422 = por %p420, %p421
      %p424 = scmp.ne.s32.totalorder %s407, %s423
      %p425 = scmp.eq.s32.totalorder %s32, 0
      %p426 = por %p424, %p425
      %p427 = scmp.le.s32.totalorder 1, %s26
      %p428 = scmp.lt.s32.totalorder %s26, 3
      %p429 = pnand %p427, %p428
      %p430 = pneg %p429
      // Predicated region
      $region9: #{tpu_custom_call.1} parent=5 // pred_check
        _
      $region10: #{tpu_custom_call.1} parent=5 // pred_check_branch
        %432 = sbr.rel (%p429) target = $region12
      $region11: #{tpu_custom_call.1} parent=5 // pred_region
        %s433 = ssub.s32 %s26, 1
        // Predicated region
        $region13: #{tpu_custom_call.1} parent=11 // pred_check
          %p434 = pneg %p99
        $region14: #{tpu_custom_call.1} parent=11 // pred_check_branch
          %436 = sbr.rel (%p434) target = $region16
        $region15: #{tpu_custom_call.1} parent=11 // pred_region
          _
        $region16: #{tpu_custom_call.1} parent=11 // pred_fallthru
          _
        // Predicated region
        $region17: #{tpu_custom_call.1} parent=11 // pred_check
          %p437 = pneg %p120
        $region18: #{tpu_custom_call.1} parent=11 // pred_check_branch
          %439 = sbr.rel (%p437) target = $region20
        $region19: #{tpu_custom_call.1} parent=11 // pred_region
          _
        $region20: #{tpu_custom_call.1} parent=11 // pred_fallthru
          _
        // Predicated region
        $region21: #{tpu_custom_call.1} parent=11 // pred_check
          %p440 = pneg %p141
        $region22: #{tpu_custom_call.1} parent=11 // pred_check_branch
          %442 = sbr.rel (%p440) target = $region24
        $region23: #{tpu_custom_call.1} parent=11 // pred_region
          _
        $region24: #{tpu_custom_call.1} parent=11 // pred_fallthru
          _
        // Predicated region
        $region25: #{tpu_custom_call.1} parent=11 // pred_check
          %p443 = pneg %p162
        $region26: #{tpu_custom_call.1} parent=11 // pred_check_branch
          %445 = sbr.rel (%p443) target = $region28
        $region27: #{tpu_custom_call.1} parent=11 // pred_region
          _
        $region28: #{tpu_custom_call.1} parent=11 // pred_fallthru
          _
        // Predicated region
        $region29: #{tpu_custom_call.1} parent=11 // pred_check
          %p446 = pneg %p183
        $region30: #{tpu_custom_call.1} parent=11 // pred_check_branch
          %448 = sbr.rel (%p446) target = $region32
        $region31: #{tpu_custom_call.1} parent=11 // pred_region
          _
        $region32: #{tpu_custom_call.1} parent=11 // pred_fallthru
          _
        // Predicated region
        $region33: #{tpu_custom_call.1} parent=11 // pred_check
          %p449 = pneg %p204
        $region34: #{tpu_custom_call.1} parent=11 // pred_check_branch
          %451 = sbr.rel (%p449) target = $region36
        $region35: #{tpu_custom_call.1} parent=11 // pred_region
          _
        $region36: #{tpu_custom_call.1} parent=11 // pred_fallthru
          _
        // Predicated region
        $region37: #{tpu_custom_call.1} parent=11 // pred_check
          %p452 = pneg %p225
        $region38: #{tpu_custom_call.1} parent=11 // pred_check_branch
          %454 = sbr.rel (%p452) target = $region40
        $region39: #{tpu_custom_call.1} parent=11 // pred_region
          _
        $region40: #{tpu_custom_call.1} parent=11 // pred_fallthru
          _
        // Predicated region
        $region41: #{tpu_custom_call.1} parent=11 // pred_check
          %p455 = pneg %p246
        $region42: #{tpu_custom_call.1} parent=11 // pred_check_branch
          %457 = sbr.rel (%p455) target = $region44
        $region43: #{tpu_custom_call.1} parent=11 // pred_region
          _
        $region44: #{tpu_custom_call.1} parent=11 // pred_fallthru
          _
        // Predicated region
        $region45: #{tpu_custom_call.1} parent=11 // pred_check
          %p458 = pneg %p267
        $region46: #{tpu_custom_call.1} parent=11 // pred_check_branch
          %460 = sbr.rel (%p458) target = $region48
        $region47: #{tpu_custom_call.1} parent=11 // pred_region
          _
        $region48: #{tpu_custom_call.1} parent=11 // pred_fallthru
          _
        // Predicated region
        $region49: #{tpu_custom_call.1} parent=11 // pred_check
          %p461 = pneg %p288
        $region50: #{tpu_custom_call.1} parent=11 // pred_check_branch
          %463 = sbr.rel (%p461) target = $region52
        $region51: #{tpu_custom_call.1} parent=11 // pred_region
          _
        $region52: #{tpu_custom_call.1} parent=11 // pred_fallthru
          _
        // Predicated region
        $region53: #{tpu_custom_call.1} parent=11 // pred_check
          %p464 = pneg %p309
        $region54: #{tpu_custom_call.1} parent=11 // pred_check_branch
          %466 = sbr.rel (%p464) target = $region56
        $region55: #{tpu_custom_call.1} parent=11 // pred_region
          _
        $region56: #{tpu_custom_call.1} parent=11 // pred_fallthru
          _
        // Predicated region
        $region57: #{tpu_custom_call.1} parent=11 // pred_check
          %p467 = pneg %p330
        $region58: #{tpu_custom_call.1} parent=11 // pred_check_branch
          %469 = sbr.rel (%p467) target = $region60
        $region59: #{tpu_custom_call.1} parent=11 // pred_region
          _
        $region60: #{tpu_custom_call.1} parent=11 // pred_fallthru
          _
        // Predicated region
        $region61: #{tpu_custom_call.1} parent=11 // pred_check
          %p470 = pneg %p351
        $region62: #{tpu_custom_call.1} parent=11 // pred_check_branch
          %472 = sbr.rel (%p470) target = $region64
        $region63: #{tpu_custom_call.1} parent=11 // pred_region
          _
        $region64: #{tpu_custom_call.1} parent=11 // pred_fallthru
          _
        // Predicated region
        $region65: #{tpu_custom_call.1} parent=11 // pred_check
          %p473 = pneg %p372
        $region66: #{tpu_custom_call.1} parent=11 // pred_check_branch
          %475 = sbr.rel (%p473) target = $region68
        $region67: #{tpu_custom_call.1} parent=11 // pred_region
          _
        $region68: #{tpu_custom_call.1} parent=11 // pred_fallthru
          _
        // Predicated region
        $region69: #{tpu_custom_call.1} parent=11 // pred_check
          %p476 = pneg %p393
        $region70: #{tpu_custom_call.1} parent=11 // pred_check_branch
          %478 = sbr.rel (%p476) target = $region72
        $region71: #{tpu_custom_call.1} parent=11 // pred_region
          _
        $region72: #{tpu_custom_call.1} parent=11 // pred_fallthru
          _
      $region12: #{tpu_custom_call.1} parent=5 // pred_fallthru
        _
      %p479 = scmp.lt.s32.totalorder %s26, 2
      // Predicated region
      $region73: #{tpu_custom_call.1} parent=5 // pred_check
        %p480 = pneg %p479
      $region74: #{tpu_custom_call.1} parent=5 // pred_check_branch
        %482 = sbr.rel (%p480) target = $region76
      $region75: #{tpu_custom_call.1} parent=5 // pred_region
        // Predicated region
        $region77: #{tpu_custom_call.1} parent=75 // pred_check
          %p483 = pneg %p46
        $region78: #{tpu_custom_call.1} parent=75 // pred_check_branch
          %485 = sbr.rel (%p483) target = $region80
        $region79: #{tpu_custom_call.1} parent=75 // pred_region
          %s486 = smul.u32 2, %s26
          %p487 = scmp.lt.s32.totalorder %s486, 3
          %s488 = scalar_select %p487, %s486, 3
          %s489 = smul.addr %s488, 8
          %s490 = scalar_lea.vmem %s0, %s489
          %s491 = smul.u32 2, %s26
        $region80: #{tpu_custom_call.1} parent=75 // pred_fallthru
          _
        // Predicated region
        $region81: #{tpu_custom_call.1} parent=75 // pred_check
          %p492 = pneg %p72
        $region82: #{tpu_custom_call.1} parent=75 // pred_check_branch
          %494 = sbr.rel (%p492) target = $region84
        $region83: #{tpu_custom_call.1} parent=75 // pred_region
          %s495 = smul.u32 2, %s26
          %p496 = scmp.lt.s32.totalorder %s495, 3
          %s497 = scalar_select %p496, %s495, 3
          %s498 = smul.addr %s497, 8
          %s499 = scalar_lea.vmem %s1, %s498
          %s500 = smul.u32 2, %s26
        $region84: #{tpu_custom_call.1} parent=75 // pred_fallthru
          _
      $region76: #{tpu_custom_call.1} parent=5 // pred_fallthru
        _
      %p501 = scmp.le.s32.totalorder 1, %s26
      %p502 = scmp.lt.s32.totalorder %s26, 3
      %p503 = pnand %p501, %p502
      %p504 = pneg %p503
      // Predicated region
      $region85: #{tpu_custom_call.1} parent=5 // pred_check
        _
      $region86: #{tpu_custom_call.1} parent=5 // pred_check_branch
        %506 = sbr.rel (%p503) target = $region88
      $region87: #{tpu_custom_call.1} parent=5 // pred_region
        %s507 = ssub.s32 %s26, 1
        %s508 = smul.u32 2, %s31
        %p509 = scmp.lt.s32.totalorder %s508, 3
        %s510 = scalar_select %p509, %s508, 3
        %s511 = smul.addr %s510, 8
        %s512 = scalar_lea.vmem %s0, %s511
        %p513 = pneg %p52
        %p514 = pneg %p49
        %s515 = smul.u32 2, %s31
        %p516 = scmp.lt.s32.totalorder %s515, 3
        %s517 = scalar_select %p516, %s515, 3
        %s518 = smul.addr %s517, 8
        %s519 = scalar_lea.vmem %s1, %s518
        %p520 = pneg %p78
        %p521 = pneg %p75
        %p522 = pneg %p99
        %p523 = pneg %p96
        %p524 = pneg %p120
        %p525 = pneg %p117
        %p526 = pneg %p141
        %p527 = pneg %p138
        %p528 = pneg %p162
        %p529 = pneg %p159
        %p530 = pneg %p183
        %p531 = pneg %p180
        %p532 = pneg %p204
        %p533 = pneg %p201
        %p534 = pneg %p225
        %p535 = pneg %p222
        %p536 = pneg %p246
        %p537 = pneg %p243
        %p538 = pneg %p267
        %p539 = pneg %p264
        %p540 = pneg %p288
        %p541 = pneg %p285
        %p542 = pneg %p309
        %p543 = pneg %p306
        %p544 = pneg %p330
        %p545 = pneg %p327
        %p546 = pneg %p351
        %p547 = pneg %p348
        %p548 = pneg %p372
        %p549 = pneg %p369
        %p550 = pneg %p393
        %p551 = pneg %p390
        %p552 = pneg %p419
        %p553 = pneg %p416
        %s554 = sand.u32 %s406, 1
        %s555 = scalar_lea.sflag [#allocation3], %s554
        %s556 = sand.u32 %s406, 1
        %s557 = smul.addr %s556, 16
        %s558 = scalar_lea.vmem [#allocation2], %s557
        %s559 = smul.u32 2, %s31
        %p560 = scmp.lt.s32.totalorder %s559, 3
        %s561 = scalar_select %p560, %s559, 3
        %s562 = smul.addr %s561, 8
        %s563 = scalar_lea.vmem %s0, %s562
        %s564 = smul.u32 2, %s31
        %s565 = smul.u32 2, %s31
        %p566 = scmp.lt.s32.totalorder %s565, 3
        %s567 = scalar_select %p566, %s565, 3
        %s568 = smul.addr %s567, 8
        %s569 = scalar_lea.vmem %s1, %s568
        %s570 = smul.u32 2, %s31
        %s571 = smul.u32 2, %s31
        %v573 = vld [vmem:[%s569] sm:$0xff]
        %v574 = vld [vmem:[%s569 + $0x8] sm:$0xff]
        %v575 = vld [vmem:[%s563] sm:$0xff]
        %v576 = vld [vmem:[%s563 + $0x8] sm:$0xff]
        %v577 = vld [vmem:[%s2] sm:$0xf]
        %vm578 = vcmask 31744
        %v580 = vsel %vm578, %v575, 0
        %v583 = vsel %vm578, %v576, 0
        %vm585 = vcmask 1043456
        %v587 = vsel %vm585, %v577, 0
        %589 = vmatpush.msra.mxu0 0.0
        %590 = vmatpush.msra.mxu0 0.0
        %591 = vmatpush.msra.mxu0 0.0
        %592 = vmatpush.msra.mxu0 0.0
        %593 = vmatpush.msra.mxu0 0.0
        %594 = vmatpush.msra.mxu0 0.0
        %595 = vmatpush.msra.mxu0 0.0
        %596 = vmatpush.msra.mxu0 0.0
        %597 = vmatpush.msra.mxu0 0.0
        %598 = vmatpush.msra.mxu0 0.0
        %599 = vmatpush.msra.mxu0 0.0
        %600 = vmatpush.msra.mxu0 0.0
        %601 = vmatpush.msra.mxu0 0.0
        %602 = vmatpush.msra.mxu0 0.0
        %603 = vmatpush.msra.mxu0 0.0
        %604 = vmatpush.msra.mxu0 %v587
        %605 = vmatmul.f32.gmra.mxu0 %v580
        %v606 = vpop.f32.mrf.mxu0
        %v607 = vadd.f32 0.0, %v606
        %608 = vmatmul.f32.gmra.mxu0 %v583
        %v609 = vpop.f32.mrf.mxu0
        %v610 = vadd.f32 0.0, %v609
        %611 = vdwg.mxu0
        %v612 = vand.u32 2147483647, %v607
        %vm613 = vcmp.le.f32.partialorder %v612, 0.7853982
        %vm614 = vcmp.lt.s32.totalorder %v607, 0
        %v615 = vand.u32 %v607, 2139095040
        %v616 = vshrl.u32 %v615, 23
        %v617 = vsub.s32 %v616, 127
        %v618 = vand.u32 2147483647, %v607
        %v619 = vand.u32 %v618, 8388607
        %v620 = vor.u32 %v619, 8388608
        %v621 = vsub.s32 0, %v620
        %v622 = vadd.s32 %v617, 1
        %vm623 = vcmp.gt.s32.totalorder %v622, 0
        %v624 = vsel %vm623, %v622, 0
        %v625 = vshrl.u32 %v624, 5
        %v626 = vand.u32 %v624, 31
        %v627 = vsub.s32 32, %v626
        %v628 = vshrl.u32 683565275, %v627
        %v629 = vshll.u32 683565275, %v626
        %v630 = vshrl.u32 2475754826, %v627
        %v631 = vor.u32 %v629, %v630
        %v632 = vshll.u32 2475754826, %v626
        %v633 = vshrl.u32 2131351028, %v627
        %v634 = vor.u32 %v632, %v633
        %v635 = vshll.u32 2131351028, %v626
        %v636 = vshrl.u32 2102212464, %v627
        %v637 = vor.u32 %v635, %v636
        %v638 = vshll.u32 2102212464, %v626
        %v639 = vshrl.u32 920167782, %v627
        %v640 = vor.u32 %v638, %v639
        %v641 = vshll.u32 920167782, %v626
        %v642 = vshrl.u32 1326507024, %v627
        %v643 = vor.u32 %v641, %v642
        %vm644 = vcmp.lt.s32.totalorder %v625, 1
        %vm645 = vcmp.lt.s32.totalorder %v625, 2
        %vm646 = vcmp.lt.s32.totalorder %v625, 3
        %vm647 = vcmp.lt.s32.totalorder %v625, 4
        %v648 = vsel %vm644, %v628, %v631
        %v649 = vsel %vm647, %v637, 2102212464
        %v650 = vsel %vm646, %v634, %v649
        %v651 = vsel %vm645, %v648, %v650
        %v652 = vsel %vm644, %v631, %v634
        %v653 = vsel %vm647, %v640, 920167782
        %v654 = vsel %vm646, %v637, %v653
        %v655 = vsel %vm645, %v652, %v654
        %v656 = vsel %vm644, %v634, %v637
        %v657 = vsel %vm647, %v643, 1326507024
        %v658 = vsel %vm646, %v640, %v657
        %v659 = vsel %vm645, %v656, %v658
        %v660 = vshll.u32 %v620, 8
        %v661 = vand.u32 %v660, 65535
        %v662 = vshrl.u32 %v660, 16
        %v663 = vand.u32 %v659, 65535
        %v664 = vshrl.u32 %v659, 16
        %v665 = vmul.u32 %v661, %v663
        %v666 = vmul.u32 %v661, %v664
        %v667 = vmul.u32 %v662, %v663
        %v668 = vmul.u32 %v662, %v664
        %v669 = vshll.u32 %v666, 16
        %v670 = vshrl.u32 %v666, 16
        %v671 = vshll.u32 %v667, 16
        %v672 = vshrl.u32 %v667, 16
        %vm673 = vc.u32 %v665, %v669
        %v674 = vsel %vm673, 1, 0
        %v675 = vadd.s32 %v665, %v669
        %v676 = vadd.s32 %v668, %v674
        %vm677 = vc.u32 %v675, %v671
        %v678 = vsel %vm677, 1, 0
        %v679 = vadd.s32 %v675, %v671
        %v680 = vadd.s32 %v676, %v678
        %v681 = vadd.s32 %v680, %v670
        %v682 = vadd.s32 %v681, %v672
        %v683 = vand.u32 %v660, 65535
        %v684 = vshrl.u32 %v660, 16
        %v685 = vand.u32 %v655, 65535
        %v686 = vshrl.u32 %v655, 16
        %v687 = vmul.u32 %v683, %v685
        %v688 = vmul.u32 %v683, %v686
        %v689 = vmul.u32 %v684, %v685
        %v690 = vmul.u32 %v684, %v686
        %v691 = vshll.u32 %v688, 16
        %v692 = vshrl.u32 %v688, 16
        %v693 = vshll.u32 %v689, 16
        %v694 = vshrl.u32 %v689, 16
        %vm695 = vc.u32 %v687, %v691
        %v696 = vsel %vm695, 1, 0
        %v697 = vadd.s32 %v687, %v691
        %v698 = vadd.s32 %v690, %v696
        %vm699 = vc.u32 %v697, %v693
        %v700 = vsel %vm699, 1, 0
        %v701 = vadd.s32 %v697, %v693
        %v702 = vadd.s32 %v698, %v700
        %v703 = vadd.s32 %v702, %v692
        %v704 = vadd.s32 %v703, %v694
        %v705 = vmul.u32 %v660, %v651
        %v706 = vadd.s32 %v682, %v701
        %vm707 = vc.u32 %v682, %v701
        %v708 = vadd.s32 %v704, 1
        %v709 = vsel %vm707, %v708, %v704
        %v710 = vadd.s32 %v705, %v709
        %v711 = vadd.s32 %v710, 536870912
        %v712 = vshrl.u32 %v711, 30
        %v713 = vshll.u32 %v712, 30
        %v714 = vsub.s32 %v710, %v713
        %vm715 = vcmp.lt.s32.totalorder %v714, 0
        %v716 = vsub.s32 0, %v714
        %v717 = vsel %vm715, %v716, %v714
        %v718 = vclz %v717
        %v719 = vsub.s32 %v718, 2
        %vm720 = vcmp.gt.s32.totalorder 0, %v719
        %v721 = vsel %vm720, 0, %v719
        %v722 = vsub.s32 32, %v721
        %v723 = vshll.u32 %v714, %v721
        %v724 = vshrl.u32 %v706, %v722
        %v725 = vor.u32 %v723, %v724
        %v726 = vsub.s32 4294967266, %v721
        %v727 = vadd.s32 %v726, 127
        %v728 = vshll.u32 %v727, 23
        %v729 = vor.u32 4788187, %v728
        %v730 = vand.u32 2147483647, %v729
        %v732 = vcvt.s32.f32 %v725
        %v733 = vmul.f32 %v732, %v730
        %v734 = vxor.u32 %v733, 2147483648
        %v735 = vsel %vm614, %v734, %v733
        %v736 = vsub.s32 4, %v712
        %v737 = vsel %vm614, %v736, %v712
        %v738 = vsel %vm613, %v607, %v735
        %v739 = vsel %vm613, 0, %v737
        %v740 = vmul.f32 %v738, %v738
        %v741 = vmul.f32 %v740, -0.001358992
        %v742 = vadd.f32 %v741, 0.041655596
        %v743 = vmul.f32 %v740, %v742
        %v744 = vadd.f32 %v743, -0.4999988
        %v745 = vmul.f32 %v740, %v744
        %v746 = vadd.f32 1.0, %v745
        %v747 = vmul.f32 %v738, %v738
        %v748 = vmul.f32 %v747, -0.00019511016
        %v749 = vadd.f32 %v748, 0.008332121
        %v750 = vmul.f32 %v747, %v749
        %v751 = vadd.f32 %v750, -0.16666654
        %v752 = vmul.f32 %v747, %v751
        %v753 = vadd.f32 %v752, 1.0
        %v754 = vmul.f32 %v753, %v738
        %vm755 = vweird.f32 %v607
        %v756 = vand.u32 %v739, 3
        %vm757 = vcmp.lt.s32.totalorder %v756, 2
        %vm758 = vcmp.eq.s32.totalorder %v756, 0
        %v759 = vxor.u32 %v754, 2147483648
        %v760 = vsel %vm758, %v746, %v759
        %vm761 = vcmp.eq.s32.totalorder %v756, 2
        %v762 = vxor.u32 %v746, 2147483648
        %v763 = vsel %vm761, %v762, %v754
        %v764 = vsel %vm757, %v760, %v763
        %v765 = vsel %vm755, nan, %v764
        %v766 = vand.u32 2147483647, %v610
        %vm767 = vcmp.le.f32.partialorder %v766, 0.7853982
        %vm768 = vcmp.lt.s32.totalorder %v610, 0
        %v769 = vand.u32 %v610, 2139095040
        %v770 = vshrl.u32 %v769, 23
        %v771 = vsub.s32 %v770, 127
        %v772 = vand.u32 2147483647, %v610
        %v773 = vand.u32 %v772, 8388607
        %v774 = vor.u32 %v773, 8388608
        %v775 = vsub.s32 0, %v774
        %v776 = vadd.s32 %v771, 1
        %vm777 = vcmp.gt.s32.totalorder %v776, 0
        %v778 = vsel %vm777, %v776, 0
        %v779 = vshrl.u32 %v778, 5
        %v780 = vand.u32 %v778, 31
        %v781 = vsub.s32 32, %v780
        %v782 = vshrl.u32 683565275, %v781
        %v783 = vshll.u32 683565275, %v780
        %v784 = vshrl.u32 2475754826, %v781
        %v785 = vor.u32 %v783, %v784
        %v786 = vshll.u32 2475754826, %v780
        %v787 = vshrl.u32 2131351028, %v781
        %v788 = vor.u32 %v786, %v787
        %v789 = vshll.u32 2131351028, %v780
        %v790 = vshrl.u32 2102212464, %v781
        %v791 = vor.u32 %v789, %v790
        %v792 = vshll.u32 2102212464, %v780
        %v793 = vshrl.u32 920167782, %v781
        %v794 = vor.u32 %v792, %v793
        %v795 = vshll.u32 920167782, %v780
        %v796 = vshrl.u32 1326507024, %v781
        %v797 = vor.u32 %v795, %v796
        %vm798 = vcmp.lt.s32.totalorder %v779, 1
        %vm799 = vcmp.lt.s32.totalorder %v779, 2
        %vm800 = vcmp.lt.s32.totalorder %v779, 3
        %vm801 = vcmp.lt.s32.totalorder %v779, 4
        %v802 = vsel %vm798, %v782, %v785
        %v803 = vsel %vm801, %v791, 2102212464
        %v804 = vsel %vm800, %v788, %v803
        %v805 = vsel %vm799, %v802, %v804
        %v806 = vsel %vm798, %v785, %v788
        %v807 = vsel %vm801, %v794, 920167782
        %v808 = vsel %vm800, %v791, %v807
        %v809 = vsel %vm799, %v806, %v808
        %v810 = vsel %vm798, %v788, %v791
        %v811 = vsel %vm801, %v797, 1326507024
        %v812 = vsel %vm800, %v794, %v811
        %v813 = vsel %vm799, %v810, %v812
        %v814 = vshll.u32 %v774, 8
        %v815 = vand.u32 %v814, 65535
        %v816 = vshrl.u32 %v814, 16
        %v817 = vand.u32 %v813, 65535
        %v818 = vshrl.u32 %v813, 16
        %v819 = vmul.u32 %v815, %v817
        %v820 = vmul.u32 %v815, %v818
        %v821 = vmul.u32 %v816, %v817
        %v822 = vmul.u32 %v816, %v818
        %v823 = vshll.u32 %v820, 16
        %v824 = vshrl.u32 %v820, 16
        %v825 = vshll.u32 %v821, 16
        %v826 = vshrl.u32 %v821, 16
        %vm827 = vc.u32 %v819, %v823
        %v828 = vsel %vm827, 1, 0
        %v829 = vadd.s32 %v819, %v823
        %v830 = vadd.s32 %v822, %v828
        %vm831 = vc.u32 %v829, %v825
        %v832 = vsel %vm831, 1, 0
        %v833 = vadd.s32 %v829, %v825
        %v834 = vadd.s32 %v830, %v832
        %v835 = vadd.s32 %v834, %v824
        %v836 = vadd.s32 %v835, %v826
        %v837 = vand.u32 %v814, 65535
        %v838 = vshrl.u32 %v814, 16
        %v839 = vand.u32 %v809, 65535
        %v840 = vshrl.u32 %v809, 16
        %v841 = vmul.u32 %v837, %v839
        %v842 = vmul.u32 %v837, %v840
        %v843 = vmul.u32 %v838, %v839
        %v844 = vmul.u32 %v838, %v840
        %v845 = vshll.u32 %v842, 16
        %v846 = vshrl.u32 %v842, 16
        %v847 = vshll.u32 %v843, 16
        %v848 = vshrl.u32 %v843, 16
        %vm849 = vc.u32 %v841, %v845
        %v850 = vsel %vm849, 1, 0
        %v851 = vadd.s32 %v841, %v845
        %v852 = vadd.s32 %v844, %v850
        %vm853 = vc.u32 %v851, %v847
        %v854 = vsel %vm853, 1, 0
        %v855 = vadd.s32 %v851, %v847
        %v856 = vadd.s32 %v852, %v854
        %v857 = vadd.s32 %v856, %v846
        %v858 = vadd.s32 %v857, %v848
        %v859 = vmul.u32 %v814, %v805
        %v860 = vadd.s32 %v836, %v855
        %vm861 = vc.u32 %v836, %v855
        %v862 = vadd.s32 %v858, 1
        %v863 = vsel %vm861, %v862, %v858
        %v864 = vadd.s32 %v859, %v863
        %v865 = vadd.s32 %v864, 536870912
        %v866 = vshrl.u32 %v865, 30
        %v867 = vshll.u32 %v866, 30
        %v868 = vsub.s32 %v864, %v867
        %vm869 = vcmp.lt.s32.totalorder %v868, 0
        %v870 = vsub.s32 0, %v868
        %v871 = vsel %vm869, %v870, %v868
        %v872 = vclz %v871
        %v873 = vsub.s32 %v872, 2
        %vm874 = vcmp.gt.s32.totalorder 0, %v873
        %v875 = vsel %vm874, 0, %v873
        %v876 = vsub.s32 32, %v875
        %v877 = vshll.u32 %v868, %v875
        %v878 = vshrl.u32 %v860, %v876
        %v879 = vor.u32 %v877, %v878
        %v880 = vsub.s32 4294967266, %v875
        %v881 = vadd.s32 %v880, 127
        %v882 = vshll.u32 %v881, 23
        %v883 = vor.u32 4788187, %v882
        %v884 = vand.u32 2147483647, %v883
        %v886 = vcvt.s32.f32 %v879
        %v887 = vmul.f32 %v886, %v884
        %v888 = vxor.u32 %v887, 2147483648
        %v889 = vsel %vm768, %v888, %v887
        %v890 = vsub.s32 4, %v866
        %v891 = vsel %vm768, %v890, %v866
        %v892 = vsel %vm767, %v610, %v889
        %v893 = vsel %vm767, 0, %v891
        %v894 = vmul.f32 %v892, %v892
        %v895 = vmul.f32 %v894, -0.001358992
        %v896 = vadd.f32 %v895, 0.041655596
        %v897 = vmul.f32 %v894, %v896
        %v898 = vadd.f32 %v897, -0.4999988
        %v899 = vmul.f32 %v894, %v898
        %v900 = vadd.f32 1.0, %v899
        %v901 = vmul.f32 %v892, %v892
        %v902 = vmul.f32 %v901, -0.00019511016
        %v903 = vadd.f32 %v902, 0.008332121
        %v904 = vmul.f32 %v901, %v903
        %v905 = vadd.f32 %v904, -0.16666654
        %v906 = vmul.f32 %v901, %v905
        %v907 = vadd.f32 %v906, 1.0
        %v908 = vmul.f32 %v907, %v892
        %vm909 = vweird.f32 %v610
        %v910 = vand.u32 %v893, 3
        %vm911 = vcmp.lt.s32.totalorder %v910, 2
        %vm912 = vcmp.eq.s32.totalorder %v910, 0
        %v913 = vxor.u32 %v908, 2147483648
        %v914 = vsel %vm912, %v900, %v913
        %vm915 = vcmp.eq.s32.totalorder %v910, 2
        %v916 = vxor.u32 %v900, 2147483648
        %v917 = vsel %vm915, %v916, %v908
        %v918 = vsel %vm911, %v914, %v917
        %v919 = vsel %vm909, nan, %v918
        %v920 = vpack.c.bf16 %v919, %v765
        %v921 = vand.u32 2147483647, %v607
        %vm922 = vcmp.le.f32.partialorder %v921, 0.7853982
        %vm923 = vcmp.lt.s32.totalorder %v607, 0
        %v924 = vand.u32 %v607, 2139095040
        %v925 = vshrl.u32 %v924, 23
        %v926 = vsub.s32 %v925, 127
        %v927 = vand.u32 2147483647, %v607
        %v928 = vand.u32 %v927, 8388607
        %v929 = vor.u32 %v928, 8388608
        %v930 = vsub.s32 0, %v929
        %v931 = vadd.s32 %v926, 1
        %vm932 = vcmp.gt.s32.totalorder %v931, 0
        %v933 = vsel %vm932, %v931, 0
        %v934 = vshrl.u32 %v933, 5
        %v935 = vand.u32 %v933, 31
        %v936 = vsub.s32 32, %v935
        %v937 = vshrl.u32 683565275, %v936
        %v938 = vshll.u32 683565275, %v935
        %v939 = vshrl.u32 2475754826, %v936
        %v940 = vor.u32 %v938, %v939
        %v941 = vshll.u32 2475754826, %v935
        %v942 = vshrl.u32 2131351028, %v936
        %v943 = vor.u32 %v941, %v942
        %v944 = vshll.u32 2131351028, %v935
        %v945 = vshrl.u32 2102212464, %v936
        %v946 = vor.u32 %v944, %v945
        %v947 = vshll.u32 2102212464, %v935
        %v948 = vshrl.u32 920167782, %v936
        %v949 = vor.u32 %v947, %v948
        %v950 = vshll.u32 920167782, %v935
        %v951 = vshrl.u32 1326507024, %v936
        %v952 = vor.u32 %v950, %v951
        %vm953 = vcmp.lt.s32.totalorder %v934, 1
        %vm954 = vcmp.lt.s32.totalorder %v934, 2
        %vm955 = vcmp.lt.s32.totalorder %v934, 3
        %vm956 = vcmp.lt.s32.totalorder %v934, 4
        %v957 = vsel %vm953, %v937, %v940
        %v958 = vsel %vm956, %v946, 2102212464
        %v959 = vsel %vm955, %v943, %v958
        %v960 = vsel %vm954, %v957, %v959
        %v961 = vsel %vm953, %v940, %v943
        %v962 = vsel %vm956, %v949, 920167782
        %v963 = vsel %vm955, %v946, %v962
        %v964 = vsel %vm954, %v961, %v963
        %v965 = vsel %vm953, %v943, %v946
        %v966 = vsel %vm956, %v952, 1326507024
        %v967 = vsel %vm955, %v949, %v966
        %v968 = vsel %vm954, %v965, %v967
        %v969 = vshll.u32 %v929, 8
        %v970 = vand.u32 %v969, 65535
        %v971 = vshrl.u32 %v969, 16
        %v972 = vand.u32 %v968, 65535
        %v973 = vshrl.u32 %v968, 16
        %v974 = vmul.u32 %v970, %v972
        %v975 = vmul.u32 %v970, %v973
        %v976 = vmul.u32 %v971, %v972
        %v977 = vmul.u32 %v971, %v973
        %v978 = vshll.u32 %v975, 16
        %v979 = vshrl.u32 %v975, 16
        %v980 = vshll.u32 %v976, 16
        %v981 = vshrl.u32 %v976, 16
        %vm982 = vc.u32 %v974, %v978
        %v983 = vsel %vm982, 1, 0
        %v984 = vadd.s32 %v974, %v978
        %v985 = vadd.s32 %v977, %v983
        %vm986 = vc.u32 %v984, %v980
        %v987 = vsel %vm986, 1, 0
        %v988 = vadd.s32 %v984, %v980
        %v989 = vadd.s32 %v985, %v987
        %v990 = vadd.s32 %v989, %v979
        %v991 = vadd.s32 %v990, %v981
        %v992 = vand.u32 %v969, 65535
        %v993 = vshrl.u32 %v969, 16
        %v994 = vand.u32 %v964, 65535
        %v995 = vshrl.u32 %v964, 16
        %v996 = vmul.u32 %v992, %v994
        %v997 = vmul.u32 %v992, %v995
        %v998 = vmul.u32 %v993, %v994
        %v999 = vmul.u32 %v993, %v995
        %v1000 = vshll.u32 %v997, 16
        %v1001 = vshrl.u32 %v997, 16
        %v1002 = vshll.u32 %v998, 16
        %v1003 = vshrl.u32 %v998, 16
        %vm1004 = vc.u32 %v996, %v1000
        %v1005 = vsel %vm1004, 1, 0
        %v1006 = vadd.s32 %v996, %v1000
        %v1007 = vadd.s32 %v999, %v1005
        %vm1008 = vc.u32 %v1006, %v1002
        %v1009 = vsel %vm1008, 1, 0
        %v1010 = vadd.s32 %v1006, %v1002
        %v1011 = vadd.s32 %v1007, %v1009
        %v1012 = vadd.s32 %v1011, %v1001
        %v1013 = vadd.s32 %v1012, %v1003
        %v1014 = vmul.u32 %v969, %v960
        %v1015 = vadd.s32 %v991, %v1010
        %vm1016 = vc.u32 %v991, %v1010
        %v1017 = vadd.s32 %v1013, 1
        %v1018 = vsel %vm1016, %v1017, %v1013
        %v1019 = vadd.s32 %v1014, %v1018
        %v1020 = vadd.s32 %v1019, 536870912
        %v1021 = vshrl.u32 %v1020, 30
        %v1022 = vshll.u32 %v1021, 30
        %v1023 = vsub.s32 %v1019, %v1022
        %vm1024 = vcmp.lt.s32.totalorder %v1023, 0
        %v1025 = vsub.s32 0, %v1023
        %v1026 = vsel %vm1024, %v1025, %v1023
        %v1027 = vclz %v1026
        %v1028 = vsub.s32 %v1027, 2
        %vm1029 = vcmp.gt.s32.totalorder 0, %v1028
        %v1030 = vsel %vm1029, 0, %v1028
        %v1031 = vsub.s32 32, %v1030
        %v1032 = vshll.u32 %v1023, %v1030
        %v1033 = vshrl.u32 %v1015, %v1031
        %v1034 = vor.u32 %v1032, %v1033
        %v1035 = vsub.s32 4294967266, %v1030
        %v1036 = vadd.s32 %v1035, 127
        %v1037 = vshll.u32 %v1036, 23
        %v1038 = vor.u32 4788187, %v1037
        %v1039 = vand.u32 2147483647, %v1038
        %v1041 = vcvt.s32.f32 %v1034
        %v1042 = vmul.f32 %v1041, %v1039
        %v1043 = vxor.u32 %v1042, 2147483648
        %v1044 = vsel %vm923, %v1043, %v1042
        %v1045 = vsub.s32 4, %v1021
        %v1046 = vsel %vm923, %v1045, %v1021
        %v1047 = vsel %vm922, %v607, %v1044
        %v1048 = vsel %vm922, 0, %v1046
        %v1049 = vmul.f32 %v1047, %v1047
        %v1050 = vmul.f32 %v1049, -0.001358992
        %v1051 = vadd.f32 %v1050, 0.041655596
        %v1052 = vmul.f32 %v1049, %v1051
        %v1053 = vadd.f32 %v1052, -0.4999988
        %v1054 = vmul.f32 %v1049, %v1053
        %v1055 = vadd.f32 1.0, %v1054
        %v1056 = vmul.f32 %v1047, %v1047
        %v1057 = vmul.f32 %v1056, -0.00019511016
        %v1058 = vadd.f32 %v1057, 0.008332121
        %v1059 = vmul.f32 %v1056, %v1058
        %v1060 = vadd.f32 %v1059, -0.16666654
        %v1061 = vmul.f32 %v1056, %v1060
        %v1062 = vadd.f32 %v1061, 1.0
        %v1063 = vmul.f32 %v1062, %v1047
        %vm1064 = vweird.f32 %v607
        %v1065 = vadd.s32 %v1048, 3
        %v1066 = vand.u32 %v1065, 3
        %vm1067 = vcmp.lt.s32.totalorder %v1066, 2
        %vm1068 = vcmp.eq.s32.totalorder %v1066, 0
        %v1069 = vxor.u32 %v1063, 2147483648
        %v1070 = vsel %vm1068, %v1055, %v1069
        %vm1071 = vcmp.eq.s32.totalorder %v1066, 2
        %v1072 = vxor.u32 %v1055, 2147483648
        %v1073 = vsel %vm1071, %v1072, %v1063
        %v1074 = vsel %vm1067, %v1070, %v1073
        %v1075 = vsel %vm1064, nan, %v1074
        %v1076 = vand.u32 2147483647, %v610
        %vm1077 = vcmp.le.f32.partialorder %v1076, 0.7853982
        %vm1078 = vcmp.lt.s32.totalorder %v610, 0
        %v1079 = vand.u32 %v610, 2139095040
        %v1080 = vshrl.u32 %v1079, 23
        %v1081 = vsub.s32 %v1080, 127
        %v1082 = vand.u32 2147483647, %v610
        %v1083 = vand.u32 %v1082, 8388607
        %v1084 = vor.u32 %v1083, 8388608
        %v1085 = vsub.s32 0, %v1084
        %v1086 = vadd.s32 %v1081, 1
        %vm1087 = vcmp.gt.s32.totalorder %v1086, 0
        %v1088 = vsel %vm1087, %v1086, 0
        %v1089 = vshrl.u32 %v1088, 5
        %v1090 = vand.u32 %v1088, 31
        %v1091 = vsub.s32 32, %v1090
        %v1092 = vshrl.u32 683565275, %v1091
        %v1093 = vshll.u32 683565275, %v1090
        %v1094 = vshrl.u32 2475754826, %v1091
        %v1095 = vor.u32 %v1093, %v1094
        %v1096 = vshll.u32 2475754826, %v1090
        %v1097 = vshrl.u32 2131351028, %v1091
        %v1098 = vor.u32 %v1096, %v1097
        %v1099 = vshll.u32 2131351028, %v1090
        %v1100 = vshrl.u32 2102212464, %v1091
        %v1101 = vor.u32 %v1099, %v1100
        %v1102 = vshll.u32 2102212464, %v1090
        %v1103 = vshrl.u32 920167782, %v1091
        %v1104 = vor.u32 %v1102, %v1103
        %v1105 = vshll.u32 920167782, %v1090
        %v1106 = vshrl.u32 1326507024, %v1091
        %v1107 = vor.u32 %v1105, %v1106
        %vm1108 = vcmp.lt.s32.totalorder %v1089, 1
        %vm1109 = vcmp.lt.s32.totalorder %v1089, 2
        %vm1110 = vcmp.lt.s32.totalorder %v1089, 3
        %vm1111 = vcmp.lt.s32.totalorder %v1089, 4
        %v1112 = vsel %vm1108, %v1092, %v1095
        %v1113 = vsel %vm1111, %v1101, 2102212464
        %v1114 = vsel %vm1110, %v1098, %v1113
        %v1115 = vsel %vm1109, %v1112, %v1114
        %v1116 = vsel %vm1108, %v1095, %v1098
        %v1117 = vsel %vm1111, %v1104, 920167782
        %v1118 = vsel %vm1110, %v1101, %v1117
        %v1119 = vsel %vm1109, %v1116, %v1118
        %v1120 = vsel %vm1108, %v1098, %v1101
        %v1121 = vsel %vm1111, %v1107, 1326507024
        %v1122 = vsel %vm1110, %v1104, %v1121
        %v1123 = vsel %vm1109, %v1120, %v1122
        %v1124 = vshll.u32 %v1084, 8
        %v1125 = vand.u32 %v1124, 65535
        %v1126 = vshrl.u32 %v1124, 16
        %v1127 = vand.u32 %v1123, 65535
        %v1128 = vshrl.u32 %v1123, 16
        %v1129 = vmul.u32 %v1125, %v1127
        %v1130 = vmul.u32 %v1125, %v1128
        %v1131 = vmul.u32 %v1126, %v1127
        %v1132 = vmul.u32 %v1126, %v1128
        %v1133 = vshll.u32 %v1130, 16
        %v1134 = vshrl.u32 %v1130, 16
        %v1135 = vshll.u32 %v1131, 16
        %v1136 = vshrl.u32 %v1131, 16
        %vm1137 = vc.u32 %v1129, %v1133
        %v1138 = vsel %vm1137, 1, 0
        %v1139 = vadd.s32 %v1129, %v1133
        %v1140 = vadd.s32 %v1132, %v1138
        %vm1141 = vc.u32 %v1139, %v1135
        %v1142 = vsel %vm1141, 1, 0
        %v1143 = vadd.s32 %v1139, %v1135
        %v1144 = vadd.s32 %v1140, %v1142
        %v1145 = vadd.s32 %v1144, %v1134
        %v1146 = vadd.s32 %v1145, %v1136
        %v1147 = vand.u32 %v1124, 65535
        %v1148 = vshrl.u32 %v1124, 16
        %v1149 = vand.u32 %v1119, 65535
        %v1150 = vshrl.u32 %v1119, 16
        %v1151 = vmul.u32 %v1147, %v1149
        %v1152 = vmul.u32 %v1147, %v1150
        %v1153 = vmul.u32 %v1148, %v1149
        %v1154 = vmul.u32 %v1148, %v1150
        %v1155 = vshll.u32 %v1152, 16
        %v1156 = vshrl.u32 %v1152, 16
        %v1157 = vshll.u32 %v1153, 16
        %v1158 = vshrl.u32 %v1153, 16
        %vm1159 = vc.u32 %v1151, %v1155
        %v1160 = vsel %vm1159, 1, 0
        %v1161 = vadd.s32 %v1151, %v1155
        %v1162 = vadd.s32 %v1154, %v1160
        %vm1163 = vc.u32 %v1161, %v1157
        %v1164 = vsel %vm1163, 1, 0
        %v1165 = vadd.s32 %v1161, %v1157
        %v1166 = vadd.s32 %v1162, %v1164
        %v1167 = vadd.s32 %v1166, %v1156
        %v1168 = vadd.s32 %v1167, %v1158
        %v1169 = vmul.u32 %v1124, %v1115
        %v1170 = vadd.s32 %v1146, %v1165
        %vm1171 = vc.u32 %v1146, %v1165
        %v1172 = vadd.s32 %v1168, 1
        %v1173 = vsel %vm1171, %v1172, %v1168
        %v1174 = vadd.s32 %v1169, %v1173
        %v1175 = vadd.s32 %v1174, 536870912
        %v1176 = vshrl.u32 %v1175, 30
        %v1177 = vshll.u32 %v1176, 30
        %v1178 = vsub.s32 %v1174, %v1177
        %vm1179 = vcmp.lt.s32.totalorder %v1178, 0
        %v1180 = vsub.s32 0, %v1178
        %v1181 = vsel %vm1179, %v1180, %v1178
        %v1182 = vclz %v1181
        %v1183 = vsub.s32 %v1182, 2
        %vm1184 = vcmp.gt.s32.totalorder 0, %v1183
        %v1185 = vsel %vm1184, 0, %v1183
        %v1186 = vsub.s32 32, %v1185
        %v1187 = vshll.u32 %v1178, %v1185
        %v1188 = vshrl.u32 %v1170, %v1186
        %v1189 = vor.u32 %v1187, %v1188
        %v1190 = vsub.s32 4294967266, %v1185
        %v1191 = vadd.s32 %v1190, 127
        %v1192 = vshll.u32 %v1191, 23
        %v1193 = vor.u32 4788187, %v1192
        %v1194 = vand.u32 2147483647, %v1193
        %v1196 = vcvt.s32.f32 %v1189
        %v1197 = vmul.f32 %v1196, %v1194
        %v1198 = vxor.u32 %v1197, 2147483648
        %v1199 = vsel %vm1078, %v1198, %v1197
        %v1200 = vsub.s32 4, %v1176
        %v1201 = vsel %vm1078, %v1200, %v1176
        %v1202 = vsel %vm1077, %v610, %v1199
        %v1203 = vsel %vm1077, 0, %v1201
        %v1204 = vmul.f32 %v1202, %v1202
        %v1205 = vmul.f32 %v1204, -0.001358992
        %v1206 = vadd.f32 %v1205, 0.041655596
        %v1207 = vmul.f32 %v1204, %v1206
        %v1208 = vadd.f32 %v1207, -0.4999988
        %v1209 = vmul.f32 %v1204, %v1208
        %v1210 = vadd.f32 1.0, %v1209
        %v1211 = vmul.f32 %v1202, %v1202
        %v1212 = vmul.f32 %v1211, -0.00019511016
        %v1213 = vadd.f32 %v1212, 0.008332121
        %v1214 = vmul.f32 %v1211, %v1213
        %v1215 = vadd.f32 %v1214, -0.16666654
        %v1216 = vmul.f32 %v1211, %v1215
        %v1217 = vadd.f32 %v1216, 1.0
        %v1218 = vmul.f32 %v1217, %v1202
        %vm1219 = vweird.f32 %v610
        %v1220 = vadd.s32 %v1203, 3
        %v1221 = vand.u32 %v1220, 3
        %vm1222 = vcmp.lt.s32.totalorder %v1221, 2
        %vm1223 = vcmp.eq.s32.totalorder %v1221, 0
        %v1224 = vxor.u32 %v1218, 2147483648
        %v1225 = vsel %vm1223, %v1210, %v1224
        %vm1226 = vcmp.eq.s32.totalorder %v1221, 2
        %v1227 = vxor.u32 %v1210, 2147483648
        %v1228 = vsel %vm1226, %v1227, %v1218
        %v1229 = vsel %vm1222, %v1225, %v1228
        %v1230 = vsel %vm1219, nan, %v1229
        %v1231 = vpack.c.bf16 %v1230, %v1075
        %v1232 = vld [vmem:[%s3] sm:$0xf]
        %v1233 = vld [vmem:[%s3 + $0x4] sm:$0xf]
        %v1234 = vld [vmem:[%s4] sm:$0xf]
        %v1235 = vld [vmem:[%s4 + $0x4] sm:$0xf]
        %v1238 = vunpack.c.l.b16 %v1234
        %v1239 = vunpack.c.l.b16 %v1235
        %v1240 = vpack.c.b16 %v1239, %v1238
        %vm1242 = vcmask 130048
        %v1244 = vsel %vm1242, %v1231, 0
        %1246 = vmatpush.bf16.msra.mxu0 0
        %1247 = vmatpush.bf16.msra.mxu0 0
        %1248 = vmatpush.bf16.msra.mxu0 0
        %1249 = vmatpush.bf16.msra.mxu0 0
        %1250 = vmatpush.bf16.msra.mxu0 0
        %1251 = vmatpush.bf16.msra.mxu0 0
        %1252 = vmatpush.bf16.msra.mxu0 0
        %1253 = vmatpush.bf16.msra.mxu0 %v1240
        %1254 = vmatmul.bf16.gmra.mxu0 %v1244
        %v1255 = vpop.f32.mrf.mxu0
        %v1256 = vadd.f32 0.0, %v1255
        %v1257 = vpop.f32.mrf.mxu0
        %v1258 = vadd.f32 0.0, %v1257
        %1259 = vdwg.mxu0
        %v1262 = vunpack.c.l.b16 %v1232
        %v1263 = vunpack.c.l.b16 %v1233
        %v1264 = vpack.c.b16 %v1263, %v1262
        %v1267 = vsel %vm1242, %v920, 0
        %1269 = vmatpush.bf16.msra.mxu0 0
        %1270 = vmatpush.bf16.msra.mxu0 0
        %1271 = vmatpush.bf16.msra.mxu0 0
        %1272 = vmatpush.bf16.msra.mxu0 0
        %1273 = vmatpush.bf16.msra.mxu0 0
        %1274 = vmatpush.bf16.msra.mxu0 0
        %1275 = vmatpush.bf16.msra.mxu0 0
        %1276 = vmatpush.bf16.msra.mxu0 %v1264
        %1277 = vmatmul.bf16.gmra.mxu0 %v1267
        %v1278 = vpop.f32.mrf.mxu0
        %v1279 = vadd.f32 %v1256, %v1278
        %v1280 = vpop.f32.mrf.mxu0
        %v1281 = vadd.f32 %v1258, %v1280
        %1282 = vdwg.mxu0
        %v1283 = vld [vmem:[%s5] sm:$0xf]
        %v1285 = vsel %vm585, %v1283, 0
        %1287 = vmatpush.msra.mxu0 0.0
        %1288 = vmatpush.msra.mxu0 0.0
        %1289 = vmatpush.msra.mxu0 0.0
        %1290 = vmatpush.msra.mxu0 0.0
        %1291 = vmatpush.msra.mxu0 0.0
        %1292 = vmatpush.msra.mxu0 0.0
        %1293 = vmatpush.msra.mxu0 0.0
        %1294 = vmatpush.msra.mxu0 0.0
        %1295 = vmatpush.msra.mxu0 0.0
        %1296 = vmatpush.msra.mxu0 0.0
        %1297 = vmatpush.msra.mxu0 0.0
        %1298 = vmatpush.msra.mxu0 0.0
        %1299 = vmatpush.msra.mxu0 0.0
        %1300 = vmatpush.msra.mxu0 0.0
        %1301 = vmatpush.msra.mxu0 0.0
        %1302 = vmatpush.msra.mxu0 %v1285
        %1303 = vmatmul.f32.gmra.mxu0 %v580
        %v1304 = vpop.f32.mrf.mxu0
        %v1305 = vadd.f32 0.0, %v1304
        %1306 = vmatmul.f32.gmra.mxu0 %v583
        %v1307 = vpop.f32.mrf.mxu0
        %v1308 = vadd.f32 0.0, %v1307
        %1309 = vdwg.mxu0
        %v1310 = vadd.f32 %v1279, %v1305
        %v1311 = vadd.f32 %v1281, %v1308
        %v1312 = vld [vmem:[%s6] sm:$0x1]
        %v1314 = vperm.slane %v1312, 0
        %v1316 = vadd.f32 %v1310, %v1314
        %v1317 = vadd.f32 %v1311, %v1314
        %v1318 = vld [vmem:[%s9] sm:$0xff]
        %v1319 = vld [vmem:[%s9 + $0x8] sm:$0xff]
        %v1320 = vld [vmem:[%s9 + $0x10] sm:$0xff]
        %v1321 = vld [vmem:[%s9 + $0x18] sm:$0xff]
        %v1322 = vld [vmem:[%s9 + $0x20] sm:$0xff]
        %v1323 = vld [vmem:[%s9 + $0x28] sm:$0xff]
        %v1324 = vld [vmem:[%s9 + $0x30] sm:$0xff]
        %v1325 = vld [vmem:[%s9 + $0x38] sm:$0xff]
        %v1326 = vld [vmem:[%s9 + $0x40] sm:$0xff]
        %v1327 = vld [vmem:[%s9 + $0x48] sm:$0xff]
        %v1328 = vld [vmem:[%s9 + $0x50] sm:$0xff]
        %v1329 = vld [vmem:[%s9 + $0x58] sm:$0xff]
        %v1330 = vld [vmem:[%s9 + $0x60] sm:$0xff]
        %v1331 = vld [vmem:[%s9 + $0x68] sm:$0xff]
        %v1332 = vld [vmem:[%s9 + $0x70] sm:$0xff]
        %v1333 = vld [vmem:[%s9 + $0x78] sm:$0xff]
        %v1334 = vld [vmem:[%s10] sm:$0xf]
        %1335 = vmatpush.msra.mxu0 %v1333
        %1336 = vmatpush.msra.mxu0 %v1332
        %1337 = vmatpush.msra.mxu0 %v1331
        %1338 = vmatpush.msra.mxu0 %v1330
        %1339 = vmatpush.msra.mxu0 %v1329
        %1340 = vmatpush.msra.mxu0 %v1328
        %1341 = vmatpush.msra.mxu0 %v1327
        %1342 = vmatpush.msra.mxu0 %v1326
        %1343 = vmatpush.msra.mxu0 %v1325
        %1344 = vmatpush.msra.mxu0 %v1324
        %1345 = vmatpush.msra.mxu0 %v1323
        %1346 = vmatpush.msra.mxu0 %v1322
        %1347 = vmatpush.msra.mxu0 %v1321
        %1348 = vmatpush.msra.mxu0 %v1320
        %1349 = vmatpush.msra.mxu0 %v1319
        %1350 = vmatpush.msra.mxu0 %v1318
        %1351 = vmatmul.f32.gmra.mxu0 %v1316
        %v1352 = vpop.f32.mrf.mxu0
        %v1353 = vadd.f32 0.0, %v1352
        %1354 = vmatmul.f32.gmra.mxu0 %v1317
        %v1355 = vpop.f32.mrf.mxu0
        %v1356 = vadd.f32 0.0, %v1355
        %1357 = vdwg.mxu0
        %v1359 = vsel %vm578, %v1353, 0
        %v1362 = vsel %vm578, %v1356, 0
        %v1365 = vsel %vm585, %v1334, 0
        %1367 = vmatpush.msra.mxu0 0.0
        %1368 = vmatpush.msra.mxu0 0.0
        %1369 = vmatpush.msra.mxu0 0.0
        %1370 = vmatpush.msra.mxu0 0.0
        %1371 = vmatpush.msra.mxu0 0.0
        %1372 = vmatpush.msra.mxu0 0.0
        %1373 = vmatpush.msra.mxu0 0.0
        %1374 = vmatpush.msra.mxu0 0.0
        %1375 = vmatpush.msra.mxu0 0.0
        %1376 = vmatpush.msra.mxu0 0.0
        %1377 = vmatpush.msra.mxu0 0.0
        %1378 = vmatpush.msra.mxu0 0.0
        %1379 = vmatpush.msra.mxu0 0.0
        %1380 = vmatpush.msra.mxu0 0.0
        %1381 = vmatpush.msra.mxu0 0.0
        %1382 = vmatpush.msra.mxu0 %v1365
        %1383 = vmatmul.f32.gmra.mxu0 %v1359
        %v1384 = vpop.f32.mrf.mxu0
        %v1385 = vadd.f32 0.0, %v1384
        %1386 = vmatmul.f32.gmra.mxu0 %v1362
        %v1387 = vpop.f32.mrf.mxu0
        %v1388 = vadd.f32 0.0, %v1387
        %1389 = vdwg.mxu0
        %v1390 = vsub.f32 %v1316, %v1385
        %v1391 = vsub.f32 %v1317, %v1388
        %v1392 = vmul.f32 %v1390, %v1390
        %v1393 = vmul.f32 %v1391, %v1391
        %1394 = vmatpush.msra.mxu0 %v1333
        %1395 = vmatpush.msra.mxu0 %v1332
        %1396 = vmatpush.msra.mxu0 %v1331
        %1397 = vmatpush.msra.mxu0 %v1330
        %1398 = vmatpush.msra.mxu0 %v1329
        %1399 = vmatpush.msra.mxu0 %v1328
        %1400 = vmatpush.msra.mxu0 %v1327
        %1401 = vmatpush.msra.mxu0 %v1326
        %1402 = vmatpush.msra.mxu0 %v1325
        %1403 = vmatpush.msra.mxu0 %v1324
        %1404 = vmatpush.msra.mxu0 %v1323
        %1405 = vmatpush.msra.mxu0 %v1322
        %1406 = vmatpush.msra.mxu0 %v1321
        %1407 = vmatpush.msra.mxu0 %v1320
        %1408 = vmatpush.msra.mxu0 %v1319
        %1409 = vmatpush.msra.mxu0 %v1318
        %1410 = vmatmul.f32.gmra.mxu0 %v1392
        %v1411 = vpop.f32.mrf.mxu0
        %v1412 = vadd.f32 0.0, %v1411
        %1413 = vmatmul.f32.gmra.mxu0 %v1393
        %v1414 = vpop.f32.mrf.mxu0
        %v1415 = vadd.f32 0.0, %v1414
        %1416 = vdwg.mxu0
        %v1418 = vsel %vm578, %v1412, 0
        %v1421 = vsel %vm578, %v1415, 0
        %1423 = vmatpush.msra.mxu0 0.0
        %1424 = vmatpush.msra.mxu0 0.0
        %1425 = vmatpush.msra.mxu0 0.0
        %1426 = vmatpush.msra.mxu0 0.0
        %1427 = vmatpush.msra.mxu0 0.0
        %1428 = vmatpush.msra.mxu0 0.0
        %1429 = vmatpush.msra.mxu0 0.0
        %1430 = vmatpush.msra.mxu0 0.0
        %1431 = vmatpush.msra.mxu0 0.0
        %1432 = vmatpush.msra.mxu0 0.0
        %1433 = vmatpush.msra.mxu0 0.0
        %1434 = vmatpush.msra.mxu0 0.0
        %1435 = vmatpush.msra.mxu0 0.0
        %1436 = vmatpush.msra.mxu0 0.0
        %1437 = vmatpush.msra.mxu0 0.0
        %1438 = vmatpush.msra.mxu0 %v1365
        %1439 = vmatmul.f32.gmra.mxu0 %v1418
        %v1440 = vpop.f32.mrf.mxu0
        %v1441 = vadd.f32 1e-05, %v1440
        %1442 = vmatmul.f32.gmra.mxu0 %v1421
        %v1443 = vpop.f32.mrf.mxu0
        %v1444 = vadd.f32 1e-05, %v1443
        %1445 = vdwg.mxu0
        %v1446 = vrsqrt.pop %v1441
        %v1447 = vmul.f32 %v1446, %v1441
        %v1448 = vmul.f32 %v1447, %v1446
        %v1449 = vmul.f32 0.5, %v1448
        %v1450 = vsub.f32 1.5, %v1449
        %v1451 = vmul.f32 %v1446, %v1450
        %vm1452 = vweird.f32 %v1441
        %vm1453 = vweird.f32 %v1446
        %vm1454 = vmor %vm1452, %vm1453
        %v1455 = vsel %vm1454, %v1446, %v1451
        %v1456 = vrsqrt.pop %v1444
        %v1457 = vmul.f32 %v1456, %v1444
        %v1458 = vmul.f32 %v1457, %v1456
        %v1459 = vmul.f32 0.5, %v1458
        %v1460 = vsub.f32 1.5, %v1459
        %v1461 = vmul.f32 %v1456, %v1460
        %vm1462 = vweird.f32 %v1444
        %vm1463 = vweird.f32 %v1456
        %vm1464 = vmor %vm1462, %vm1463
        %v1465 = vsel %vm1464, %v1456, %v1461
        %v1466 = vmul.f32 %v1390, %v1455
        %v1467 = vmul.f32 %v1391, %v1465
        %v1468 = vld [vmem:[%s7] sm:$0x1]
        %v1470 = vperm.slane %v1468, 0
        %v1472 = vmul.f32 %v1466, %v1470
        %v1473 = vmul.f32 %v1467, %v1470
        %v1474 = vld [vmem:[%s8] sm:$0x1]
        %v1476 = vperm.slane %v1474, 0
        %v1478 = vadd.f32 %v1472, %v1476
        %v1479 = vadd.f32 %v1473, %v1476
        %v1480 = vmax.f32 %v1478, 0.0
        %v1481 = vmax.f32 %v1479, 0.0
        %v1482 = vpack.c.bf16 %v1481, %v1480
        %v1483 = vld [vmem:[%s11] sm:$0xf]
        %v1484 = vld [vmem:[%s11 + $0x4] sm:$0xf]
        %v1485 = vld [vmem:[%s11 + $0x8] sm:$0xf]
        %v1486 = vld [vmem:[%s11 + $0xc] sm:$0xf]
        %v1487 = vld [vmem:[%s11 + $0x10] sm:$0xf]
        %v1488 = vld [vmem:[%s11 + $0x14] sm:$0xf]
        %v1489 = vld [vmem:[%s11 + $0x18] sm:$0xf]
        %v1490 = vld [vmem:[%s11 + $0x1c] sm:$0xf]
        %v1491 = vld [vmem:[%s11 + $0x20] sm:$0xf]
        %v1492 = vld [vmem:[%s11 + $0x24] sm:$0xf]
        %v1493 = vld [vmem:[%s11 + $0x28] sm:$0xf]
        %v1494 = vld [vmem:[%s11 + $0x2c] sm:$0xf]
        %v1495 = vld [vmem:[%s11 + $0x30] sm:$0xf]
        %v1496 = vld [vmem:[%s11 + $0x34] sm:$0xf]
        %v1497 = vld [vmem:[%s11 + $0x38] sm:$0xf]
        %v1498 = vld [vmem:[%s11 + $0x3c] sm:$0xf]
        %v1499 = vld [vmem:[%s12] sm:$0x1]
        %v1501 = vperm.slane %v1499, 0
        %v1519 = vunpack.c.l.b16 %v1483
        %v1520 = vunpack.c.l.b16 %v1484
        %v1521 = vunpack.c.l.b16 %v1485
        %v1522 = vunpack.c.l.b16 %v1486
        %v1523 = vunpack.c.l.b16 %v1487
        %v1524 = vunpack.c.l.b16 %v1488
        %v1525 = vunpack.c.l.b16 %v1489
        %v1526 = vunpack.c.l.b16 %v1490
        %v1527 = vunpack.c.l.b16 %v1491
        %v1528 = vunpack.c.l.b16 %v1492
        %v1529 = vunpack.c.l.b16 %v1493
        %v1530 = vunpack.c.l.b16 %v1494
        %v1531 = vunpack.c.l.b16 %v1495
        %v1532 = vunpack.c.l.b16 %v1496
        %v1533 = vunpack.c.l.b16 %v1497
        %v1534 = vunpack.c.l.b16 %v1498
        %v1535 = vpack.c.b16 %v1520, %v1519
        %v1536 = vpack.c.b16 %v1522, %v1521
        %v1537 = vpack.c.b16 %v1524, %v1523
        %v1538 = vpack.c.b16 %v1526, %v1525
        %v1539 = vpack.c.b16 %v1528, %v1527
        %v1540 = vpack.c.b16 %v1530, %v1529
        %v1541 = vpack.c.b16 %v1532, %v1531
        %v1542 = vpack.c.b16 %v1534, %v1533
        %1551 = vmatpush.bf16.msra.mxu0 %v1542
        %1552 = vmatpush.bf16.msra.mxu0 %v1541
        %1553 = vmatpush.bf16.msra.mxu0 %v1540
        %1554 = vmatpush.bf16.msra.mxu0 %v1539
        %1555 = vmatpush.bf16.msra.mxu0 %v1538
        %1556 = vmatpush.bf16.msra.mxu0 %v1537
        %1557 = vmatpush.bf16.msra.mxu0 %v1536
        %1558 = vmatpush.bf16.msra.mxu0 %v1535
        %1559 = vmatmul.bf16.gmra.mxu0 %v1482
        %v1560 = vpop.f32.mrf.mxu0
        %v1561 = vadd.f32 %v1501, %v1560
        %v1562 = vpop.f32.mrf.mxu0
        %v1563 = vadd.f32 %v1501, %v1562
        %1564 = vdwg.mxu0
        %v1565 = vadd.f32 %v1561, %v573
        %v1566 = vadd.f32 %v1563, %v574
        %v1567 = vld [vmem:[%s13] sm:$0x1]
        %v1568 = vld [vmem:[%s14] sm:$0x1]
        %vm1569 = vcmask 261120
        %v1570 = vsel %vm1569, %v1565, 0.0
        %1571 = vadd.xlane.f32.xlu0 %v1570
        %v1572 = vpop.xlane.xlu0 %1571
        %v1573 = vsel %vm1569, %v1566, 0.0
        %1574 = vadd.xlane.f32.xlu0 %v1573
        %v1575 = vpop.xlane.xlu0 %1574
        %v1576 = vrcp.pop 32.0
        %v1577 = vmul.f32 32.0, %v1576
        %v1578 = vsub.f32 1.0, %v1577
        %v1579 = vmul.f32 %v1576, %v1578
        %v1580 = vadd.f32 %v1576, %v1579
        %vm1581 = vweird.f32 %v1576
        %v1582 = vsel %vm1581, %v1576, %v1580
        %v1583 = vmul.f32 %v1572, %v1582
        %v1584 = vmul.f32 %v1575, %v1582
        %v1585 = vsub.f32 %v1565, %v1583
        %v1586 = vsub.f32 %v1566, %v1584
        %v1587 = vmul.f32 %v1585, %v1585
        %v1588 = vmul.f32 %v1586, %v1586
        %v1589 = vsel %vm1569, %v1587, 0.0
        %1590 = vadd.xlane.f32.xlu0 %v1589
        %v1591 = vpop.xlane.xlu0 %1590
        %v1592 = vsel %vm1569, %v1588, 0.0
        %1593 = vadd.xlane.f32.xlu0 %v1592
        %v1594 = vpop.xlane.xlu0 %1593
        %v1595 = vmul.f32 %v1591, %v1582
        %v1596 = vmul.f32 %v1594, %v1582
        %v1597 = vadd.f32 %v1595, 1e-05
        %v1598 = vadd.f32 %v1596, 1e-05
        %v1599 = vrsqrt.pop %v1597
        %v1600 = vmul.f32 %v1599, %v1597
        %v1601 = vmul.f32 %v1600, %v1599
        %v1602 = vmul.f32 0.5, %v1601
        %v1603 = vsub.f32 1.5, %v1602
        %v1604 = vmul.f32 %v1599, %v1603
        %vm1605 = vweird.f32 %v1597
        %vm1606 = vweird.f32 %v1599
        %vm1607 = vmor %vm1605, %vm1606
        %v1608 = vsel %vm1607, %v1599, %v1604
        %v1609 = vrsqrt.pop %v1598
        %v1610 = vmul.f32 %v1609, %v1598
        %v1611 = vmul.f32 %v1610, %v1609
        %v1612 = vmul.f32 0.5, %v1611
        %v1613 = vsub.f32 1.5, %v1612
        %v1614 = vmul.f32 %v1609, %v1613
        %vm1615 = vweird.f32 %v1598
        %vm1616 = vweird.f32 %v1609
        %vm1617 = vmor %vm1615, %vm1616
        %v1618 = vsel %vm1617, %v1609, %v1614
        %v1619 = vmul.f32 %v1585, %v1608
        %v1620 = vmul.f32 %v1586, %v1618
        %v1622 = vperm.slane %v1567, 0
        %v1624 = vmul.f32 %v1619, %v1622
        %v1625 = vmul.f32 %v1620, %v1622
        %v1627 = vperm.slane %v1568, 0
        %v1629 = vadd.f32 %v1624, %v1627
        %v1630 = vadd.f32 %v1625, %v1627
        %v1631 = vmax.f32 %v1629, 0.0
        %v1632 = vmax.f32 %v1630, 0.0
        %v1633 = vpack.c.bf16 %v1632, %v1631
        %v1634 = vld [vmem:[%s15] sm:$0xf]
        %v1635 = vld [vmem:[%s15 + $0x4] sm:$0xf]
        %v1636 = vld [vmem:[%s15 + $0x8] sm:$0xf]
        %v1637 = vld [vmem:[%s15 + $0xc] sm:$0xf]
        %v1638 = vld [vmem:[%s16] sm:$0x1]
        %v1640 = vperm.slane %v1638, 0
        %v1646 = vunpack.c.l.b16 %v1634
        %v1647 = vunpack.c.l.b16 %v1635
        %v1648 = vunpack.c.l.b16 %v1636
        %v1649 = vunpack.c.l.b16 %v1637
        %v1650 = vpack.c.b16 %v1647, %v1646
        %v1651 = vpack.c.b16 %v1649, %v1648
        %v1655 = vsel %vm1569, %v1633, 0
        %1657 = vmatpush.bf16.msra.mxu0 0
        %1658 = vmatpush.bf16.msra.mxu0 0
        %1659 = vmatpush.bf16.msra.mxu0 0
        %1660 = vmatpush.bf16.msra.mxu0 0
        %1661 = vmatpush.bf16.msra.mxu0 0
        %1662 = vmatpush.bf16.msra.mxu0 0
        %1663 = vmatpush.bf16.msra.mxu0 %v1651
        %1664 = vmatpush.bf16.msra.mxu0 %v1650
        %1665 = vmatmul.bf16.gmra.mxu0 %v1655
        %v1666 = vpop.f32.mrf.mxu0
        %v1667 = vadd.f32 %v1640, %v1666
        %v1668 = vpop.f32.mrf.mxu0
        %v1669 = vadd.f32 %v1640, %v1668
        %1670 = vdwg.mxu0
        %1671 = vst.msk [vmem:[%s558] sm:$0xff] %vm1569, %v1667
        %1672 = vst.msk [vmem:[%s558 + $0x8] sm:$0xff] %vm1569, %v1669
        %s1673 = sand.u32 %s406, 1
        %s1674 = scalar_lea.sflag [#allocation3], %s1673
        %s1675 = sand.u32 %s406, 1
        %s1676 = smul.addr %s1675, 16
        %s1677 = scalar_lea.vmem [#allocation2], %s1676
        // Predicated region
        $region89: #{tpu_custom_call.1} parent=87 // pred_check
          %p1678 = pneg %p416
        $region90: #{tpu_custom_call.1} parent=87 // pred_check_branch
          %1680 = sbr.rel (%p1678) target = $region92
        $region91: #{tpu_custom_call.1} parent=87 // pred_region
          %s1681 = smul.u32 2, %s31
          %1683 = vsyncadd %s1674, 0
          %s1684 = smul.addr %s1681, 8
          %s1685 = scalar_lea.hbm %s17, %s1684
          %s1686 = sshll.u32 %s1677, 4
          %s1687 = int_to_ptr.vmem [resolvable:$true] %s1686
          %s1688 = sshll.u32 %s1685, 4
          %s1689 = int_to_ptr.hbm [resolvable:$true] %s1688
          %1694 = dma.vmem_to_hbm [thread:$0]  %s1687, 256, %s1689, %s1674, 128, 128, 8
        $region92: #{tpu_custom_call.1} parent=87 // pred_fallthru
          _
      $region88: #{tpu_custom_call.1} parent=5 // pred_fallthru
        _
      %p1695 = scmp.le.s32.totalorder 2, %s26
      // Predicated region
      $region93: #{tpu_custom_call.1} parent=5 // pred_check
        %p1696 = pneg %p1695
      $region94: #{tpu_custom_call.1} parent=5 // pred_check_branch
        %1698 = sbr.rel (%p1696) target = $region96
      $region95: #{tpu_custom_call.1} parent=5 // pred_region
        %s1699 = ssub.s32 %s26, 2
        // Predicated region
        $region97: #{tpu_custom_call.1} parent=95 // pred_check
          %p1700 = pneg %p422
        $region98: #{tpu_custom_call.1} parent=95 // pred_check_branch
          %1702 = sbr.rel (%p1700) target = $region100
        $region99: #{tpu_custom_call.1} parent=95 // pred_region
          %s1703 = sand.u32 %s407, 1
          %s1704 = scalar_lea.sflag [#allocation3], %s1703
          %s1705 = sand.u32 %s407, 1
          %s1706 = smul.addr %s1705, 16
          %s1707 = scalar_lea.vmem [#allocation2], %s1706
          %1709 = dma.done %s1704, 256
        $region100: #{tpu_custom_call.1} parent=95 // pred_fallthru
          _
      $region96: #{tpu_custom_call.1} parent=5 // pred_fallthru
        _
    $region6: #{tpu_custom_call.1} parent=1 // loop_footer
      %s30 = sadd.s32 1, %s26
    $region7: #{tpu_custom_call.1} parent=1 // loop_footer_branch
      %25 = sbr.rel target = $region3
    $region8: #{tpu_custom_call.1} parent=1 // loop_exit
      _
    %1710 = vsyncpa [#allocation3], 1
    %s1711 = scalar_lea.sflag [#allocation3], 1
    %1712 = vsyncpa %s1711, 1

</llo_original>
